<compile_context>
chip_gen: v5e
topology: v5e:2x2
jax: 0.10.0
libtpu: 0.0.40
codegen_flags: <defaults>
</compile_context>

<pallas_src>
import functools

import jax
import jax.numpy as jnp
from jax import lax
from jax.experimental import pallas as pl
from jax.experimental.pallas import tpu as pltpu


LANE_TILE = 512        # lanes per row of the layout (multiple of 128)
MAX_BLOCK_ROWS = 1024  # 1024 x 512 f32 = 2 MiB per block
N_ACC = 4              # independent accumulators (ILP for the 4 VALU slots)


def _round_up(n, m):
    return ((n + m - 1) // m) * m


def _widenet_kernel(hidden, x_ref, w1_ref, b1_ref, w2_ref, b2_ref, o_ref):
    """x_ref/o_ref: (BLOCK_ROWS, LANE_TILE) f32 VMEM tiles (batch on sublanes+lanes).

    w1_ref, b1_ref, w2_ref: (H,) f32 in SMEM; b2_ref: (1,) f32 in SMEM.
    Computes  y = b2 + sum_h w2[h] * relu(w1[h] * x + b1[h])  on the VPU.
    """
    rows, _ = x_ref.shape
    # Row-chunk size: 8 sublanes (one vreg row-group) when possible; when the
    # whole array fits in <=8 rows the block equals the array and we take it
    # in one go (never index past the VMEM buffer).
    sub = 8 if rows % 8 == 0 else rows
    steps = rows // sub

    # Hoist SMEM scalar reads out of the row-chunk loop (once per grid step).
    w1 = [w1_ref[h] for h in range(hidden)]
    b1 = [b1_ref[h] for h in range(hidden)]
    w2 = [w2_ref[h] for h in range(hidden)]
    b2 = b2_ref[0]

    n_acc = min(N_ACC, hidden)

    def body(r, carry):
        i = pl.multiple_of(r * sub, sub)
        x = x_ref[pl.ds(i, sub), :]                       # (sub, LANE_TILE) in vregs
        accs = [jnp.zeros_like(x) for _ in range(n_acc)]
        for h in range(hidden):                           # static unroll over H
            pre = x * w1[h] + b1[h]                       # scalar-broadcast FMA (VPU)
            accs[h % n_acc] = accs[h % n_acc] + w2[h] * jnp.maximum(pre, 0.0)
        # Tree-sum the partial accumulators.
        while len(accs) > 1:
            nxt = [accs[j] + accs[j + 1] for j in range(0, len(accs) - 1, 2)]
            if len(accs) % 2:
                nxt.append(accs[-1])
            accs = nxt
        o_ref[pl.ds(i, sub), :] = accs[0] + b2
        return carry

    lax.fori_loop(0, steps, body, 0)


def widenet_forward(x, w1, b1, w2, b2, *, lane_tile=LANE_TILE,
                    max_block_rows=MAX_BLOCK_ROWS):
    """x: (N, 1) f32.  w1/b1/w2: (H,) f32.  b2: (1,) f32.  Returns (N, 1) f32."""
    N = x.shape[0]
    hidden = int(w1.shape[0])

    xf = jnp.ravel(x).astype(jnp.float32)        # (N,1) -> (N,): metadata only
    n_pad = _round_up(N, lane_tile)
    padded = n_pad != N
    if padded:
        # Only the ragged tail (< lane_tile elements) forces this extra copy;
        # callers with N % lane_tile == 0 get a zero-copy reshape.
        xf = jnp.pad(xf, (0, n_pad - N))
    n_rows = n_pad // lane_tile
    x2 = xf.reshape(n_rows, lane_tile)           # contiguous reshape (free if no pad)

    # Block rows: multiple of 8, at least 2 grid steps when there is enough
    # data (v7x 2-TC load balance), capped at ~2 MiB/block so depth-2
    # double-buffering of input+output fits v7x's scoped VMEM.
    if n_rows <= 8:
        block_rows = n_rows                      # single block == whole array
    else:
        block_rows = min(max_block_rows, _round_up(pl.cdiv(n_rows, 2), 8))
    num_tiles = pl.cdiv(n_rows, block_rows)

    kernel = functools.partial(_widenet_kernel, hidden)

    cost = pl.CostEstimate(
        flops=5 * hidden * n_pad,                        # mul+add+max+mul+add / elem
        transcendentals=0,
        bytes_accessed=(2 * n_pad + 3 * hidden + 1) * 4,
    )

    x_spec = pl.BlockSpec((block_rows, lane_tile), lambda i: (i, 0))
    smem_spec = pl.BlockSpec(memory_space=pltpu.MemorySpace.SMEM)

    y2 = pl.pallas_call(
        kernel,
        out_shape=jax.ShapeDtypeStruct((n_rows, lane_tile), jnp.float32),
        grid=(num_tiles,),
        in_specs=[x_spec, smem_spec, smem_spec, smem_spec, smem_spec],
        out_specs=pl.BlockSpec((block_rows, lane_tile), lambda i: (i, 0)),
        compiler_params=pltpu.CompilerParams(
            dimension_semantics=("parallel",),           # megacore sharding on v7x
            vmem_limit_bytes=32 * 1024 * 1024,
        ),
        cost_estimate=cost,
    )(x2, w1, b1, w2, b2)

    if padded:
        return y2.reshape(-1)[:N].reshape(N, 1)
    return y2.reshape(N, 1)                              # metadata-only reshape


def init_widenet_params(key, hidden_size):
    """Deterministic init mirroring nn.Linear defaults (uniform +/- 1/sqrt(fan_in))."""
    hidden_size = max(1, hidden_size)
    k1w, k1b, k2w, k2b = jax.random.split(key, 4)

    bound1 = 1.0  # fan_in = 1 for fc1
    w1 = jax.random.uniform(k1w, (hidden_size,), jnp.float32, -bound1, bound1)
    b1 = jax.random.uniform(k1b, (hidden_size,), jnp.float32, -bound1, bound1)

    bound2 = 1.0 / float(jnp.sqrt(jnp.float32(hidden_size)))  # fan_in = H for fc2
    w2 = jax.random.uniform(k2w, (hidden_size,), jnp.float32, -bound2, bound2)
    b2 = jax.random.uniform(k2b, (1,), jnp.float32, -bound2, bound2)
    return w1, b1, w2, b2


def widenet_reference(x, w1, b1, w2, b2):
    """Pure-JAX reference of the same forward pass (PyTorch semantics)."""
    h = jnp.maximum(x * w1[None, :] + b1[None, :], 0.0)   # (N, H)
    return h @ w2[:, None] + b2                            # (N, 1)


# TODO(synk): the PyTorch train() loop (MSE + SGD) is host-side training logic,
# not part of the forward pass, so it is intentionally not implemented as a kernel.


if __name__ == "__main__":
    key = jax.random.PRNGKey(0)
    hidden_size = 32
    kp, kx1, kx2 = jax.random.split(key, 3)
    w1, b1, w2, b2 = init_widenet_params(kp, hidden_size)

    # Case 1: N divisible by LANE_TILE -> zero-copy layout, 2 even grid steps.
    batch = 8192
    x = jax.random.normal(kx1, (batch, 1), jnp.float32)
    y = widenet_forward(x, w1, b1, w2, b2)
    jax.block_until_ready(y)
    y_ref = widenet_reference(x, w1, b1, w2, b2)
    assert y.shape == (batch, 1)
    assert jnp.allclose(y, y_ref, atol=1e-5, rtol=1e-5)

    # Case 2: ragged batch -> minimal tail pad + boundary-clipped block.
    batch2 = 1000
    x2 = jax.random.normal(kx2, (batch2, 1), jnp.float32)
    y2 = widenet_forward(x2, w1, b1, w2, b2)
    jax.block_until_ready(y2)
    y2_ref = widenet_reference(x2, w1, b1, w2, b2)
    assert y2.shape == (batch2, 1)
    assert jnp.allclose(y2, y2_ref, atol=1e-5, rtol=1e-5)

    print("KERNEL_OK")
</pallas_src>

<mosaic_0001>
module attributes {stable_mosaic.version = 11 : i64} {
  func.func @_widenet_kernel(%arg0: i32, %arg1: memref<8x512xf32, #tpu.memory_space<vmem>>, %arg2: memref<32xf32, #tpu.memory_space<smem>>, %arg3: memref<32xf32, #tpu.memory_space<smem>>, %arg4: memref<32xf32, #tpu.memory_space<smem>>, %arg5: memref<1xf32, #tpu.memory_space<smem>>, %arg6: memref<8x512xf32, #tpu.memory_space<vmem>>) attributes {dimension_semantics = [#tpu.dimension_semantics<parallel>], iteration_bounds = array<i64: 2>, scalar_prefetch = 0 : i64, scratch_operands = 0 : i64, tpu.core_type = #tpu.core_type<tc>, window_params = [{transform_indices = @transform_0, window_bounds = array<i64: 8, 512>}, {transform_indices = @transform_1, window_bounds = array<i64: 32>}, {transform_indices = @transform_2, window_bounds = array<i64: 32>}, {transform_indices = @transform_3, window_bounds = array<i64: 32>}, {transform_indices = @transform_4, window_bounds = array<i64: 1>}, {transform_indices = @transform_5, window_bounds = array<i64: 8, 512>}]} {
    %c0 = arith.constant 0 : index
    %0 = memref.load %arg2[%c0] : memref<32xf32, #tpu.memory_space<smem>>
    %c1 = arith.constant 1 : index
    %1 = memref.load %arg2[%c1] : memref<32xf32, #tpu.memory_space<smem>>
    %c2 = arith.constant 2 : index
    %2 = memref.load %arg2[%c2] : memref<32xf32, #tpu.memory_space<smem>>
    %c3 = arith.constant 3 : index
    %3 = memref.load %arg2[%c3] : memref<32xf32, #tpu.memory_space<smem>>
    %c4 = arith.constant 4 : index
    %4 = memref.load %arg2[%c4] : memref<32xf32, #tpu.memory_space<smem>>
    %c5 = arith.constant 5 : index
    %5 = memref.load %arg2[%c5] : memref<32xf32, #tpu.memory_space<smem>>
    %c6 = arith.constant 6 : index
    %6 = memref.load %arg2[%c6] : memref<32xf32, #tpu.memory_space<smem>>
    %c7 = arith.constant 7 : index
    %7 = memref.load %arg2[%c7] : memref<32xf32, #tpu.memory_space<smem>>
    %c8 = arith.constant 8 : index
    %8 = memref.load %arg2[%c8] : memref<32xf32, #tpu.memory_space<smem>>
    %c9 = arith.constant 9 : index
    %9 = memref.load %arg2[%c9] : memref<32xf32, #tpu.memory_space<smem>>
    %c10 = arith.constant 10 : index
    %10 = memref.load %arg2[%c10] : memref<32xf32, #tpu.memory_space<smem>>
    %c11 = arith.constant 11 : index
    %11 = memref.load %arg2[%c11] : memref<32xf32, #tpu.memory_space<smem>>
    %c12 = arith.constant 12 : index
    %12 = memref.load %arg2[%c12] : memref<32xf32, #tpu.memory_space<smem>>
    %c13 = arith.constant 13 : index
    %13 = memref.load %arg2[%c13] : memref<32xf32, #tpu.memory_space<smem>>
    %c14 = arith.constant 14 : index
    %14 = memref.load %arg2[%c14] : memref<32xf32, #tpu.memory_space<smem>>
    %c15 = arith.constant 15 : index
    %15 = memref.load %arg2[%c15] : memref<32xf32, #tpu.memory_space<smem>>
    %c16 = arith.constant 16 : index
    %16 = memref.load %arg2[%c16] : memref<32xf32, #tpu.memory_space<smem>>
    %c17 = arith.constant 17 : index
    %17 = memref.load %arg2[%c17] : memref<32xf32, #tpu.memory_space<smem>>
    %c18 = arith.constant 18 : index
    %18 = memref.load %arg2[%c18] : memref<32xf32, #tpu.memory_space<smem>>
    %c19 = arith.constant 19 : index
    %19 = memref.load %arg2[%c19] : memref<32xf32, #tpu.memory_space<smem>>
    %c20 = arith.constant 20 : index
    %20 = memref.load %arg2[%c20] : memref<32xf32, #tpu.memory_space<smem>>
    %c21 = arith.constant 21 : index
    %21 = memref.load %arg2[%c21] : memref<32xf32, #tpu.memory_space<smem>>
    %c22 = arith.constant 22 : index
    %22 = memref.load %arg2[%c22] : memref<32xf32, #tpu.memory_space<smem>>
    %c23 = arith.constant 23 : index
    %23 = memref.load %arg2[%c23] : memref<32xf32, #tpu.memory_space<smem>>
    %c24 = arith.constant 24 : index
    %24 = memref.load %arg2[%c24] : memref<32xf32, #tpu.memory_space<smem>>
    %c25 = arith.constant 25 : index
    %25 = memref.load %arg2[%c25] : memref<32xf32, #tpu.memory_space<smem>>
    %c26 = arith.constant 26 : index
    %26 = memref.load %arg2[%c26] : memref<32xf32, #tpu.memory_space<smem>>
    %c27 = arith.constant 27 : index
    %27 = memref.load %arg2[%c27] : memref<32xf32, #tpu.memory_space<smem>>
    %c28 = arith.constant 28 : index
    %28 = memref.load %arg2[%c28] : memref<32xf32, #tpu.memory_space<smem>>
    %c29 = arith.constant 29 : index
    %29 = memref.load %arg2[%c29] : memref<32xf32, #tpu.memory_space<smem>>
    %c30 = arith.constant 30 : index
    %30 = memref.load %arg2[%c30] : memref<32xf32, #tpu.memory_space<smem>>
    %c31 = arith.constant 31 : index
    %31 = memref.load %arg2[%c31] : memref<32xf32, #tpu.memory_space<smem>>
    %c0_0 = arith.constant 0 : index
    %32 = memref.load %arg3[%c0_0] : memref<32xf32, #tpu.memory_space<smem>>
    %c1_1 = arith.constant 1 : index
    %33 = memref.load %arg3[%c1_1] : memref<32xf32, #tpu.memory_space<smem>>
    %c2_2 = arith.constant 2 : index
    %34 = memref.load %arg3[%c2_2] : memref<32xf32, #tpu.memory_space<smem>>
    %c3_3 = arith.constant 3 : index
    %35 = memref.load %arg3[%c3_3] : memref<32xf32, #tpu.memory_space<smem>>
    %c4_4 = arith.constant 4 : index
    %36 = memref.load %arg3[%c4_4] : memref<32xf32, #tpu.memory_space<smem>>
    %c5_5 = arith.constant 5 : index
    %37 = memref.load %arg3[%c5_5] : memref<32xf32, #tpu.memory_space<smem>>
    %c6_6 = arith.constant 6 : index
    %38 = memref.load %arg3[%c6_6] : memref<32xf32, #tpu.memory_space<smem>>
    %c7_7 = arith.constant 7 : index
    %39 = memref.load %arg3[%c7_7] : memref<32xf32, #tpu.memory_space<smem>>
    %c8_8 = arith.constant 8 : index
    %40 = memref.load %arg3[%c8_8] : memref<32xf32, #tpu.memory_space<smem>>
    %c9_9 = arith.constant 9 : index
    %41 = memref.load %arg3[%c9_9] : memref<32xf32, #tpu.memory_space<smem>>
    %c10_10 = arith.constant 10 : index
    %42 = memref.load %arg3[%c10_10] : memref<32xf32, #tpu.memory_space<smem>>
    %c11_11 = arith.constant 11 : index
    %43 = memref.load %arg3[%c11_11] : memref<32xf32, #tpu.memory_space<smem>>
    %c12_12 = arith.constant 12 : index
    %44 = memref.load %arg3[%c12_12] : memref<32xf32, #tpu.memory_space<smem>>
    %c13_13 = arith.constant 13 : index
    %45 = memref.load %arg3[%c13_13] : memref<32xf32, #tpu.memory_space<smem>>
    %c14_14 = arith.constant 14 : index
    %46 = memref.load %arg3[%c14_14] : memref<32xf32, #tpu.memory_space<smem>>
    %c15_15 = arith.constant 15 : index
    %47 = memref.load %arg3[%c15_15] : memref<32xf32, #tpu.memory_space<smem>>
    %c16_16 = arith.constant 16 : index
    %48 = memref.load %arg3[%c16_16] : memref<32xf32, #tpu.memory_space<smem>>
    %c17_17 = arith.constant 17 : index
    %49 = memref.load %arg3[%c17_17] : memref<32xf32, #tpu.memory_space<smem>>
    %c18_18 = arith.constant 18 : index
    %50 = memref.load %arg3[%c18_18] : memref<32xf32, #tpu.memory_space<smem>>
    %c19_19 = arith.constant 19 : index
    %51 = memref.load %arg3[%c19_19] : memref<32xf32, #tpu.memory_space<smem>>
    %c20_20 = arith.constant 20 : index
    %52 = memref.load %arg3[%c20_20] : memref<32xf32, #tpu.memory_space<smem>>
    %c21_21 = arith.constant 21 : index
    %53 = memref.load %arg3[%c21_21] : memref<32xf32, #tpu.memory_space<smem>>
    %c22_22 = arith.constant 22 : index
    %54 = memref.load %arg3[%c22_22] : memref<32xf32, #tpu.memory_space<smem>>
    %c23_23 = arith.constant 23 : index
    %55 = memref.load %arg3[%c23_23] : memref<32xf32, #tpu.memory_space<smem>>
    %c24_24 = arith.constant 24 : index
    %56 = memref.load %arg3[%c24_24] : memref<32xf32, #tpu.memory_space<smem>>
    %c25_25 = arith.constant 25 : index
    %57 = memref.load %arg3[%c25_25] : memref<32xf32, #tpu.memory_space<smem>>
    %c26_26 = arith.constant 26 : index
    %58 = memref.load %arg3[%c26_26] : memref<32xf32, #tpu.memory_space<smem>>
    %c27_27 = arith.constant 27 : index
    %59 = memref.load %arg3[%c27_27] : memref<32xf32, #tpu.memory_space<smem>>
    %c28_28 = arith.constant 28 : index
    %60 = memref.load %arg3[%c28_28] : memref<32xf32, #tpu.memory_space<smem>>
    %c29_29 = arith.constant 29 : index
    %61 = memref.load %arg3[%c29_29] : memref<32xf32, #tpu.memory_space<smem>>
    %c30_30 = arith.constant 30 : index
    %62 = memref.load %arg3[%c30_30] : memref<32xf32, #tpu.memory_space<smem>>
    %c31_31 = arith.constant 31 : index
    %63 = memref.load %arg3[%c31_31] : memref<32xf32, #tpu.memory_space<smem>>
    %c0_32 = arith.constant 0 : index
    %64 = memref.load %arg4[%c0_32] : memref<32xf32, #tpu.memory_space<smem>>
    %c1_33 = arith.constant 1 : index
    %65 = memref.load %arg4[%c1_33] : memref<32xf32, #tpu.memory_space<smem>>
    %c2_34 = arith.constant 2 : index
    %66 = memref.load %arg4[%c2_34] : memref<32xf32, #tpu.memory_space<smem>>
    %c3_35 = arith.constant 3 : index
    %67 = memref.load %arg4[%c3_35] : memref<32xf32, #tpu.memory_space<smem>>
    %c4_36 = arith.constant 4 : index
    %68 = memref.load %arg4[%c4_36] : memref<32xf32, #tpu.memory_space<smem>>
    %c5_37 = arith.constant 5 : index
    %69 = memref.load %arg4[%c5_37] : memref<32xf32, #tpu.memory_space<smem>>
    %c6_38 = arith.constant 6 : index
    %70 = memref.load %arg4[%c6_38] : memref<32xf32, #tpu.memory_space<smem>>
    %c7_39 = arith.constant 7 : index
    %71 = memref.load %arg4[%c7_39] : memref<32xf32, #tpu.memory_space<smem>>
    %c8_40 = arith.constant 8 : index
    %72 = memref.load %arg4[%c8_40] : memref<32xf32, #tpu.memory_space<smem>>
    %c9_41 = arith.constant 9 : index
    %73 = memref.load %arg4[%c9_41] : memref<32xf32, #tpu.memory_space<smem>>
    %c10_42 = arith.constant 10 : index
    %74 = memref.load %arg4[%c10_42] : memref<32xf32, #tpu.memory_space<smem>>
    %c11_43 = arith.constant 11 : index
    %75 = memref.load %arg4[%c11_43] : memref<32xf32, #tpu.memory_space<smem>>
    %c12_44 = arith.constant 12 : index
    %76 = memref.load %arg4[%c12_44] : memref<32xf32, #tpu.memory_space<smem>>
    %c13_45 = arith.constant 13 : index
    %77 = memref.load %arg4[%c13_45] : memref<32xf32, #tpu.memory_space<smem>>
    %c14_46 = arith.constant 14 : index
    %78 = memref.load %arg4[%c14_46] : memref<32xf32, #tpu.memory_space<smem>>
    %c15_47 = arith.constant 15 : index
    %79 = memref.load %arg4[%c15_47] : memref<32xf32, #tpu.memory_space<smem>>
    %c16_48 = arith.constant 16 : index
    %80 = memref.load %arg4[%c16_48] : memref<32xf32, #tpu.memory_space<smem>>
    %c17_49 = arith.constant 17 : index
    %81 = memref.load %arg4[%c17_49] : memref<32xf32, #tpu.memory_space<smem>>
    %c18_50 = arith.constant 18 : index
    %82 = memref.load %arg4[%c18_50] : memref<32xf32, #tpu.memory_space<smem>>
    %c19_51 = arith.constant 19 : index
    %83 = memref.load %arg4[%c19_51] : memref<32xf32, #tpu.memory_space<smem>>
    %c20_52 = arith.constant 20 : index
    %84 = memref.load %arg4[%c20_52] : memref<32xf32, #tpu.memory_space<smem>>
    %c21_53 = arith.constant 21 : index
    %85 = memref.load %arg4[%c21_53] : memref<32xf32, #tpu.memory_space<smem>>
    %c22_54 = arith.constant 22 : index
    %86 = memref.load %arg4[%c22_54] : memref<32xf32, #tpu.memory_space<smem>>
    %c23_55 = arith.constant 23 : index
    %87 = memref.load %arg4[%c23_55] : memref<32xf32, #tpu.memory_space<smem>>
    %c24_56 = arith.constant 24 : index
    %88 = memref.load %arg4[%c24_56] : memref<32xf32, #tpu.memory_space<smem>>
    %c25_57 = arith.constant 25 : index
    %89 = memref.load %arg4[%c25_57] : memref<32xf32, #tpu.memory_space<smem>>
    %c26_58 = arith.constant 26 : index
    %90 = memref.load %arg4[%c26_58] : memref<32xf32, #tpu.memory_space<smem>>
    %c27_59 = arith.constant 27 : index
    %91 = memref.load %arg4[%c27_59] : memref<32xf32, #tpu.memory_space<smem>>
    %c28_60 = arith.constant 28 : index
    %92 = memref.load %arg4[%c28_60] : memref<32xf32, #tpu.memory_space<smem>>
    %c29_61 = arith.constant 29 : index
    %93 = memref.load %arg4[%c29_61] : memref<32xf32, #tpu.memory_space<smem>>
    %c30_62 = arith.constant 30 : index
    %94 = memref.load %arg4[%c30_62] : memref<32xf32, #tpu.memory_space<smem>>
    %c31_63 = arith.constant 31 : index
    %95 = memref.load %arg4[%c31_63] : memref<32xf32, #tpu.memory_space<smem>>
    %c0_64 = arith.constant 0 : index
    %96 = memref.load %arg5[%c0_64] : memref<1xf32, #tpu.memory_space<smem>>
    %c0_i32 = arith.constant 0 : i32
    %c8_i32 = arith.constant 8 : i32
    %97 = arith.muli %c0_i32, %c8_i32 : i32
    %98 = tpu.assume_multiple %97, 8 : i32
    %99 = arith.index_cast %98 : i32 to index
    %c0_65 = arith.constant 0 : index
    %100 = vector.load %arg1[%99, %c0_65] : memref<8x512xf32, #tpu.memory_space<vmem>>, vector<8x512xf32>
    %cst = arith.constant 0.000000e+00 : f32
    %101 = vector.broadcast %cst : f32 to vector<8x512xf32>
    %cst_66 = arith.constant 0.000000e+00 : f32
    %102 = vector.broadcast %cst_66 : f32 to vector<8x512xf32>
    %cst_67 = arith.constant 0.000000e+00 : f32
    %103 = vector.broadcast %cst_67 : f32 to vector<8x512xf32>
    %cst_68 = arith.constant 0.000000e+00 : f32
    %104 = vector.broadcast %cst_68 : f32 to vector<8x512xf32>
    %105 = vector.broadcast %0 : f32 to vector<8x512xf32>
    %106 = arith.mulf %100, %105 : vector<8x512xf32>
    %107 = vector.broadcast %32 : f32 to vector<8x512xf32>
    %108 = arith.addf %106, %107 : vector<8x512xf32>
    %cst_69 = arith.constant 0.000000e+00 : f32
    %109 = vector.broadcast %cst_69 : f32 to vector<8x512xf32>
    %110 = arith.maximumf %108, %109 : vector<8x512xf32>
    %111 = vector.broadcast %64 : f32 to vector<8x512xf32>
    %112 = arith.mulf %111, %110 : vector<8x512xf32>
    %113 = arith.addf %101, %112 : vector<8x512xf32>
    %114 = vector.broadcast %1 : f32 to vector<8x512xf32>
    %115 = arith.mulf %100, %114 : vector<8x512xf32>
    %116 = vector.broadcast %33 : f32 to vector<8x512xf32>
    %117 = arith.addf %115, %116 : vector<8x512xf32>
    %cst_70 = arith.constant 0.000000e+00 : f32
    %118 = vector.broadcast %cst_70 : f32 to vector<8x512xf32>
    %119 = arith.maximumf %117, %118 : vector<8x512xf32>
    %120 = vector.broadcast %65 : f32 to vector<8x512xf32>
    %121 = arith.mulf %120, %119 : vector<8x512xf32>
    %122 = arith.addf %102, %121 : vector<8x512xf32>
    %123 = vector.broadcast %2 : f32 to vector<8x512xf32>
    %124 = arith.mulf %100, %123 : vector<8x512xf32>
    %125 = vector.broadcast %34 : f32 to vector<8x512xf32>
    %126 = arith.addf %124, %125 : vector<8x512xf32>
    %cst_71 = arith.constant 0.000000e+00 : f32
    %127 = vector.broadcast %cst_71 : f32 to vector<8x512xf32>
    %128 = arith.maximumf %126, %127 : vector<8x512xf32>
    %129 = vector.broadcast %66 : f32 to vector<8x512xf32>
    %130 = arith.mulf %129, %128 : vector<8x512xf32>
    %131 = arith.addf %103, %130 : vector<8x512xf32>
    %132 = vector.broadcast %3 : f32 to vector<8x512xf32>
    %133 = arith.mulf %100, %132 : vector<8x512xf32>
    %134 = vector.broadcast %35 : f32 to vector<8x512xf32>
    %135 = arith.addf %133, %134 : vector<8x512xf32>
    %cst_72 = arith.constant 0.000000e+00 : f32
    %136 = vector.broadcast %cst_72 : f32 to vector<8x512xf32>
    %137 = arith.maximumf %135, %136 : vector<8x512xf32>
    %138 = vector.broadcast %67 : f32 to vector<8x512xf32>
    %139 = arith.mulf %138, %137 : vector<8x512xf32>
    %140 = arith.addf %104, %139 : vector<8x512xf32>
    %141 = vector.broadcast %4 : f32 to vector<8x512xf32>
    %142 = arith.mulf %100, %141 : vector<8x512xf32>
    %143 = vector.broadcast %36 : f32 to vector<8x512xf32>
    %144 = arith.addf %142, %143 : vector<8x512xf32>
    %cst_73 = arith.constant 0.000000e+00 : f32
    %145 = vector.broadcast %cst_73 : f32 to vector<8x512xf32>
    %146 = arith.maximumf %144, %145 : vector<8x512xf32>
    %147 = vector.broadcast %68 : f32 to vector<8x512xf32>
    %148 = arith.mulf %147, %146 : vector<8x512xf32>
    %149 = arith.addf %113, %148 : vector<8x512xf32>
    %150 = vector.broadcast %5 : f32 to vector<8x512xf32>
    %151 = arith.mulf %100, %150 : vector<8x512xf32>
    %152 = vector.broadcast %37 : f32 to vector<8x512xf32>
    %153 = arith.addf %151, %152 : vector<8x512xf32>
    %cst_74 = arith.constant 0.000000e+00 : f32
    %154 = vector.broadcast %cst_74 : f32 to vector<8x512xf32>
    %155 = arith.maximumf %153, %154 : vector<8x512xf32>
    %156 = vector.broadcast %69 : f32 to vector<8x512xf32>
    %157 = arith.mulf %156, %155 : vector<8x512xf32>
    %158 = arith.addf %122, %157 : vector<8x512xf32>
    %159 = vector.broadcast %6 : f32 to vector<8x512xf32>
    %160 = arith.mulf %100, %159 : vector<8x512xf32>
    %161 = vector.broadcast %38 : f32 to vector<8x512xf32>
    %162 = arith.addf %160, %161 : vector<8x512xf32>
    %cst_75 = arith.constant 0.000000e+00 : f32
    %163 = vector.broadcast %cst_75 : f32 to vector<8x512xf32>
    %164 = arith.maximumf %162, %163 : vector<8x512xf32>
    %165 = vector.broadcast %70 : f32 to vector<8x512xf32>
    %166 = arith.mulf %165, %164 : vector<8x512xf32>
    %167 = arith.addf %131, %166 : vector<8x512xf32>
    %168 = vector.broadcast %7 : f32 to vector<8x512xf32>
    %169 = arith.mulf %100, %168 : vector<8x512xf32>
    %170 = vector.broadcast %39 : f32 to vector<8x512xf32>
    %171 = arith.addf %169, %170 : vector<8x512xf32>
    %cst_76 = arith.constant 0.000000e+00 : f32
    %172 = vector.broadcast %cst_76 : f32 to vector<8x512xf32>
    %173 = arith.maximumf %171, %172 : vector<8x512xf32>
    %174 = vector.broadcast %71 : f32 to vector<8x512xf32>
    %175 = arith.mulf %174, %173 : vector<8x512xf32>
    %176 = arith.addf %140, %175 : vector<8x512xf32>
    %177 = vector.broadcast %8 : f32 to vector<8x512xf32>
    %178 = arith.mulf %100, %177 : vector<8x512xf32>
    %179 = vector.broadcast %40 : f32 to vector<8x512xf32>
    %180 = arith.addf %178, %179 : vector<8x512xf32>
    %cst_77 = arith.constant 0.000000e+00 : f32
    %181 = vector.broadcast %cst_77 : f32 to vector<8x512xf32>
    %182 = arith.maximumf %180, %181 : vector<8x512xf32>
    %183 = vector.broadcast %72 : f32 to vector<8x512xf32>
    %184 = arith.mulf %183, %182 : vector<8x512xf32>
    %185 = arith.addf %149, %184 : vector<8x512xf32>
    %186 = vector.broadcast %9 : f32 to vector<8x512xf32>
    %187 = arith.mulf %100, %186 : vector<8x512xf32>
    %188 = vector.broadcast %41 : f32 to vector<8x512xf32>
    %189 = arith.addf %187, %188 : vector<8x512xf32>
    %cst_78 = arith.constant 0.000000e+00 : f32
    %190 = vector.broadcast %cst_78 : f32 to vector<8x512xf32>
    %191 = arith.maximumf %189, %190 : vector<8x512xf32>
    %192 = vector.broadcast %73 : f32 to vector<8x512xf32>
    %193 = arith.mulf %192, %191 : vector<8x512xf32>
    %194 = arith.addf %158, %193 : vector<8x512xf32>
    %195 = vector.broadcast %10 : f32 to vector<8x512xf32>
    %196 = arith.mulf %100, %195 : vector<8x512xf32>
    %197 = vector.broadcast %42 : f32 to vector<8x512xf32>
    %198 = arith.addf %196, %197 : vector<8x512xf32>
    %cst_79 = arith.constant 0.000000e+00 : f32
    %199 = vector.broadcast %cst_79 : f32 to vector<8x512xf32>
    %200 = arith.maximumf %198, %199 : vector<8x512xf32>
    %201 = vector.broadcast %74 : f32 to vector<8x512xf32>
    %202 = arith.mulf %201, %200 : vector<8x512xf32>
    %203 = arith.addf %167, %202 : vector<8x512xf32>
    %204 = vector.broadcast %11 : f32 to vector<8x512xf32>
    %205 = arith.mulf %100, %204 : vector<8x512xf32>
    %206 = vector.broadcast %43 : f32 to vector<8x512xf32>
    %207 = arith.addf %205, %206 : vector<8x512xf32>
    %cst_80 = arith.constant 0.000000e+00 : f32
    %208 = vector.broadcast %cst_80 : f32 to vector<8x512xf32>
    %209 = arith.maximumf %207, %208 : vector<8x512xf32>
    %210 = vector.broadcast %75 : f32 to vector<8x512xf32>
    %211 = arith.mulf %210, %209 : vector<8x512xf32>
    %212 = arith.addf %176, %211 : vector<8x512xf32>
    %213 = vector.broadcast %12 : f32 to vector<8x512xf32>
    %214 = arith.mulf %100, %213 : vector<8x512xf32>
    %215 = vector.broadcast %44 : f32 to vector<8x512xf32>
    %216 = arith.addf %214, %215 : vector<8x512xf32>
    %cst_81 = arith.constant 0.000000e+00 : f32
    %217 = vector.broadcast %cst_81 : f32 to vector<8x512xf32>
    %218 = arith.maximumf %216, %217 : vector<8x512xf32>
    %219 = vector.broadcast %76 : f32 to vector<8x512xf32>
    %220 = arith.mulf %219, %218 : vector<8x512xf32>
    %221 = arith.addf %185, %220 : vector<8x512xf32>
    %222 = vector.broadcast %13 : f32 to vector<8x512xf32>
    %223 = arith.mulf %100, %222 : vector<8x512xf32>
    %224 = vector.broadcast %45 : f32 to vector<8x512xf32>
    %225 = arith.addf %223, %224 : vector<8x512xf32>
    %cst_82 = arith.constant 0.000000e+00 : f32
    %226 = vector.broadcast %cst_82 : f32 to vector<8x512xf32>
    %227 = arith.maximumf %225, %226 : vector<8x512xf32>
    %228 = vector.broadcast %77 : f32 to vector<8x512xf32>
    %229 = arith.mulf %228, %227 : vector<8x512xf32>
    %230 = arith.addf %194, %229 : vector<8x512xf32>
    %231 = vector.broadcast %14 : f32 to vector<8x512xf32>
    %232 = arith.mulf %100, %231 : vector<8x512xf32>
    %233 = vector.broadcast %46 : f32 to vector<8x512xf32>
    %234 = arith.addf %232, %233 : vector<8x512xf32>
    %cst_83 = arith.constant 0.000000e+00 : f32
    %235 = vector.broadcast %cst_83 : f32 to vector<8x512xf32>
    %236 = arith.maximumf %234, %235 : vector<8x512xf32>
    %237 = vector.broadcast %78 : f32 to vector<8x512xf32>
    %238 = arith.mulf %237, %236 : vector<8x512xf32>
    %239 = arith.addf %203, %238 : vector<8x512xf32>
    %240 = vector.broadcast %15 : f32 to vector<8x512xf32>
    %241 = arith.mulf %100, %240 : vector<8x512xf32>
    %242 = vector.broadcast %47 : f32 to vector<8x512xf32>
    %243 = arith.addf %241, %242 : vector<8x512xf32>
    %cst_84 = arith.constant 0.000000e+00 : f32
    %244 = vector.broadcast %cst_84 : f32 to vector<8x512xf32>
    %245 = arith.maximumf %243, %244 : vector<8x512xf32>
    %246 = vector.broadcast %79 : f32 to vector<8x512xf32>
    %247 = arith.mulf %246, %245 : vector<8x512xf32>
    %248 = arith.addf %212, %247 : vector<8x512xf32>
    %249 = vector.broadcast %16 : f32 to vector<8x512xf32>
    %250 = arith.mulf %100, %249 : vector<8x512xf32>
    %251 = vector.broadcast %48 : f32 to vector<8x512xf32>
    %252 = arith.addf %250, %251 : vector<8x512xf32>
    %cst_85 = arith.constant 0.000000e+00 : f32
    %253 = vector.broadcast %cst_85 : f32 to vector<8x512xf32>
    %254 = arith.maximumf %252, %253 : vector<8x512xf32>
    %255 = vector.broadcast %80 : f32 to vector<8x512xf32>
    %256 = arith.mulf %255, %254 : vector<8x512xf32>
    %257 = arith.addf %221, %256 : vector<8x512xf32>
    %258 = vector.broadcast %17 : f32 to vector<8x512xf32>
    %259 = arith.mulf %100, %258 : vector<8x512xf32>
    %260 = vector.broadcast %49 : f32 to vector<8x512xf32>
    %261 = arith.addf %259, %260 : vector<8x512xf32>
    %cst_86 = arith.constant 0.000000e+00 : f32
    %262 = vector.broadcast %cst_86 : f32 to vector<8x512xf32>
    %263 = arith.maximumf %261, %262 : vector<8x512xf32>
    %264 = vector.broadcast %81 : f32 to vector<8x512xf32>
    %265 = arith.mulf %264, %263 : vector<8x512xf32>
    %266 = arith.addf %230, %265 : vector<8x512xf32>
    %267 = vector.broadcast %18 : f32 to vector<8x512xf32>
    %268 = arith.mulf %100, %267 : vector<8x512xf32>
    %269 = vector.broadcast %50 : f32 to vector<8x512xf32>
    %270 = arith.addf %268, %269 : vector<8x512xf32>
    %cst_87 = arith.constant 0.000000e+00 : f32
    %271 = vector.broadcast %cst_87 : f32 to vector<8x512xf32>
    %272 = arith.maximumf %270, %271 : vector<8x512xf32>
    %273 = vector.broadcast %82 : f32 to vector<8x512xf32>
    %274 = arith.mulf %273, %272 : vector<8x512xf32>
    %275 = arith.addf %239, %274 : vector<8x512xf32>
    %276 = vector.broadcast %19 : f32 to vector<8x512xf32>
    %277 = arith.mulf %100, %276 : vector<8x512xf32>
    %278 = vector.broadcast %51 : f32 to vector<8x512xf32>
    %279 = arith.addf %277, %278 : vector<8x512xf32>
    %cst_88 = arith.constant 0.000000e+00 : f32
    %280 = vector.broadcast %cst_88 : f32 to vector<8x512xf32>
    %281 = arith.maximumf %279, %280 : vector<8x512xf32>
    %282 = vector.broadcast %83 : f32 to vector<8x512xf32>
    %283 = arith.mulf %282, %281 : vector<8x512xf32>
    %284 = arith.addf %248, %283 : vector<8x512xf32>
    %285 = vector.broadcast %20 : f32 to vector<8x512xf32>
    %286 = arith.mulf %100, %285 : vector<8x512xf32>
    %287 = vector.broadcast %52 : f32 to vector<8x512xf32>
    %288 = arith.addf %286, %287 : vector<8x512xf32>
    %cst_89 = arith.constant 0.000000e+00 : f32
    %289 = vector.broadcast %cst_89 : f32 to vector<8x512xf32>
    %290 = arith.maximumf %288, %289 : vector<8x512xf32>
    %291 = vector.broadcast %84 : f32 to vector<8x512xf32>
    %292 = arith.mulf %291, %290 : vector<8x512xf32>
    %293 = arith.addf %257, %292 : vector<8x512xf32>
    %294 = vector.broadcast %21 : f32 to vector<8x512xf32>
    %295 = arith.mulf %100, %294 : vector<8x512xf32>
    %296 = vector.broadcast %53 : f32 to vector<8x512xf32>
    %297 = arith.addf %295, %296 : vector<8x512xf32>
    %cst_90 = arith.constant 0.000000e+00 : f32
    %298 = vector.broadcast %cst_90 : f32 to vector<8x512xf32>
    %299 = arith.maximumf %297, %298 : vector<8x512xf32>
    %300 = vector.broadcast %85 : f32 to vector<8x512xf32>
    %301 = arith.mulf %300, %299 : vector<8x512xf32>
    %302 = arith.addf %266, %301 : vector<8x512xf32>
    %303 = vector.broadcast %22 : f32 to vector<8x512xf32>
    %304 = arith.mulf %100, %303 : vector<8x512xf32>
    %305 = vector.broadcast %54 : f32 to vector<8x512xf32>
    %306 = arith.addf %304, %305 : vector<8x512xf32>
    %cst_91 = arith.constant 0.000000e+00 : f32
    %307 = vector.broadcast %cst_91 : f32 to vector<8x512xf32>
    %308 = arith.maximumf %306, %307 : vector<8x512xf32>
    %309 = vector.broadcast %86 : f32 to vector<8x512xf32>
    %310 = arith.mulf %309, %308 : vector<8x512xf32>
    %311 = arith.addf %275, %310 : vector<8x512xf32>
    %312 = vector.broadcast %23 : f32 to vector<8x512xf32>
    %313 = arith.mulf %100, %312 : vector<8x512xf32>
    %314 = vector.broadcast %55 : f32 to vector<8x512xf32>
    %315 = arith.addf %313, %314 : vector<8x512xf32>
    %cst_92 = arith.constant 0.000000e+00 : f32
    %316 = vector.broadcast %cst_92 : f32 to vector<8x512xf32>
    %317 = arith.maximumf %315, %316 : vector<8x512xf32>
    %318 = vector.broadcast %87 : f32 to vector<8x512xf32>
    %319 = arith.mulf %318, %317 : vector<8x512xf32>
    %320 = arith.addf %284, %319 : vector<8x512xf32>
    %321 = vector.broadcast %24 : f32 to vector<8x512xf32>
    %322 = arith.mulf %100, %321 : vector<8x512xf32>
    %323 = vector.broadcast %56 : f32 to vector<8x512xf32>
    %324 = arith.addf %322, %323 : vector<8x512xf32>
    %cst_93 = arith.constant 0.000000e+00 : f32
    %325 = vector.broadcast %cst_93 : f32 to vector<8x512xf32>
    %326 = arith.maximumf %324, %325 : vector<8x512xf32>
    %327 = vector.broadcast %88 : f32 to vector<8x512xf32>
    %328 = arith.mulf %327, %326 : vector<8x512xf32>
    %329 = arith.addf %293, %328 : vector<8x512xf32>
    %330 = vector.broadcast %25 : f32 to vector<8x512xf32>
    %331 = arith.mulf %100, %330 : vector<8x512xf32>
    %332 = vector.broadcast %57 : f32 to vector<8x512xf32>
    %333 = arith.addf %331, %332 : vector<8x512xf32>
    %cst_94 = arith.constant 0.000000e+00 : f32
    %334 = vector.broadcast %cst_94 : f32 to vector<8x512xf32>
    %335 = arith.maximumf %333, %334 : vector<8x512xf32>
    %336 = vector.broadcast %89 : f32 to vector<8x512xf32>
    %337 = arith.mulf %336, %335 : vector<8x512xf32>
    %338 = arith.addf %302, %337 : vector<8x512xf32>
    %339 = vector.broadcast %26 : f32 to vector<8x512xf32>
    %340 = arith.mulf %100, %339 : vector<8x512xf32>
    %341 = vector.broadcast %58 : f32 to vector<8x512xf32>
    %342 = arith.addf %340, %341 : vector<8x512xf32>
    %cst_95 = arith.constant 0.000000e+00 : f32
    %343 = vector.broadcast %cst_95 : f32 to vector<8x512xf32>
    %344 = arith.maximumf %342, %343 : vector<8x512xf32>
    %345 = vector.broadcast %90 : f32 to vector<8x512xf32>
    %346 = arith.mulf %345, %344 : vector<8x512xf32>
    %347 = arith.addf %311, %346 : vector<8x512xf32>
    %348 = vector.broadcast %27 : f32 to vector<8x512xf32>
    %349 = arith.mulf %100, %348 : vector<8x512xf32>
    %350 = vector.broadcast %59 : f32 to vector<8x512xf32>
    %351 = arith.addf %349, %350 : vector<8x512xf32>
    %cst_96 = arith.constant 0.000000e+00 : f32
    %352 = vector.broadcast %cst_96 : f32 to vector<8x512xf32>
    %353 = arith.maximumf %351, %352 : vector<8x512xf32>
    %354 = vector.broadcast %91 : f32 to vector<8x512xf32>
    %355 = arith.mulf %354, %353 : vector<8x512xf32>
    %356 = arith.addf %320, %355 : vector<8x512xf32>
    %357 = vector.broadcast %28 : f32 to vector<8x512xf32>
    %358 = arith.mulf %100, %357 : vector<8x512xf32>
    %359 = vector.broadcast %60 : f32 to vector<8x512xf32>
    %360 = arith.addf %358, %359 : vector<8x512xf32>
    %cst_97 = arith.constant 0.000000e+00 : f32
    %361 = vector.broadcast %cst_97 : f32 to vector<8x512xf32>
    %362 = arith.maximumf %360, %361 : vector<8x512xf32>
    %363 = vector.broadcast %92 : f32 to vector<8x512xf32>
    %364 = arith.mulf %363, %362 : vector<8x512xf32>
    %365 = arith.addf %329, %364 : vector<8x512xf32>
    %366 = vector.broadcast %29 : f32 to vector<8x512xf32>
    %367 = arith.mulf %100, %366 : vector<8x512xf32>
    %368 = vector.broadcast %61 : f32 to vector<8x512xf32>
    %369 = arith.addf %367, %368 : vector<8x512xf32>
    %cst_98 = arith.constant 0.000000e+00 : f32
    %370 = vector.broadcast %cst_98 : f32 to vector<8x512xf32>
    %371 = arith.maximumf %369, %370 : vector<8x512xf32>
    %372 = vector.broadcast %93 : f32 to vector<8x512xf32>
    %373 = arith.mulf %372, %371 : vector<8x512xf32>
    %374 = arith.addf %338, %373 : vector<8x512xf32>
    %375 = vector.broadcast %30 : f32 to vector<8x512xf32>
    %376 = arith.mulf %100, %375 : vector<8x512xf32>
    %377 = vector.broadcast %62 : f32 to vector<8x512xf32>
    %378 = arith.addf %376, %377 : vector<8x512xf32>
    %cst_99 = arith.constant 0.000000e+00 : f32
    %379 = vector.broadcast %cst_99 : f32 to vector<8x512xf32>
    %380 = arith.maximumf %378, %379 : vector<8x512xf32>
    %381 = vector.broadcast %94 : f32 to vector<8x512xf32>
    %382 = arith.mulf %381, %380 : vector<8x512xf32>
    %383 = arith.addf %347, %382 : vector<8x512xf32>
    %384 = vector.broadcast %31 : f32 to vector<8x512xf32>
    %385 = arith.mulf %100, %384 : vector<8x512xf32>
    %386 = vector.broadcast %63 : f32 to vector<8x512xf32>
    %387 = arith.addf %385, %386 : vector<8x512xf32>
    %cst_100 = arith.constant 0.000000e+00 : f32
    %388 = vector.broadcast %cst_100 : f32 to vector<8x512xf32>
    %389 = arith.maximumf %387, %388 : vector<8x512xf32>
    %390 = vector.broadcast %95 : f32 to vector<8x512xf32>
    %391 = arith.mulf %390, %389 : vector<8x512xf32>
    %392 = arith.addf %356, %391 : vector<8x512xf32>
    %393 = arith.addf %365, %374 : vector<8x512xf32>
    %394 = arith.addf %383, %392 : vector<8x512xf32>
    %395 = arith.addf %393, %394 : vector<8x512xf32>
    %396 = vector.broadcast %96 : f32 to vector<8x512xf32>
    %397 = arith.addf %395, %396 : vector<8x512xf32>
    %398 = arith.index_cast %98 : i32 to index
    %c0_101 = arith.constant 0 : index
    %399 = vector.load %arg6[%398, %c0_101] : memref<8x512xf32, #tpu.memory_space<vmem>>, vector<8x512xf32>
    tpu.vector_store %arg6[%398, %c0_101], %397 {strides = array<i32>} : memref<8x512xf32, #tpu.memory_space<vmem>>, vector<8x512xf32>,
    %c1_i32 = arith.constant 1 : i32
    return
  }
  func.func @transform_0(%arg0: i32) -> (i32, i32) {
    %c0_i32 = arith.constant 0 : i32
    %c0_i32_0 = arith.constant 0 : i32
    return %arg0, %c0_i32 : i32, i32
  }
  func.func @transform_1(%arg0: i32) -> i32 {
    %c0_i32 = arith.constant 0 : i32
    %c0_i32_0 = arith.constant 0 : i32
    return %c0_i32 : i32
  }
  func.func @transform_2(%arg0: i32) -> i32 {
    %c0_i32 = arith.constant 0 : i32
    %c0_i32_0 = arith.constant 0 : i32
    return %c0_i32 : i32
  }
  func.func @transform_3(%arg0: i32) -> i32 {
    %c0_i32 = arith.constant 0 : i32
    %c0_i32_0 = arith.constant 0 : i32
    return %c0_i32 : i32
  }
  func.func @transform_4(%arg0: i32) -> i32 {
    %c0_i32 = arith.constant 0 : i32
    %c0_i32_0 = arith.constant 0 : i32
    return %c0_i32 : i32
  }
  func.func @transform_5(%arg0: i32) -> (i32, i32) {
    %c0_i32 = arith.constant 0 : i32
    %c0_i32_0 = arith.constant 0 : i32
    return %arg0, %c0_i32 : i32, i32
  }
}

</mosaic_0001>

<llo_original>
// kernel: tpu_custom_call.1
$region0: #{tpu_custom_call.1}
  #allocation0 [shape = 'u32[]', space=smem, size = 0x4, offset = 0x4, fixed_abs, tag = 'smem constant byte address 0x4 - core index']
  #allocation1 [shape = 'u32[72,128]{1,0:T(1,128)}', space=vmem, size = 0x9000, scoped, tag = 'internal scratch']
  #allocation2 [shape = 'f32[1]{0:T(128)S(6)}', space=smem, size = 0x200, scoped, tag = 'scoped memory for tpu_custom_call.1']
  %s0 = inlined_call_operand.hbm [shape: f32[16,512], index: 0, kind: input, shape index: {}]
  %s1 = inlined_call_operand.vmem [shape: f32[32], index: 1, kind: input, shape index: {}]
  %s2 = inlined_call_operand.vmem [shape: f32[32], index: 2, kind: input, shape index: {}]
  %s3 = inlined_call_operand.vmem [shape: f32[32], index: 3, kind: input, shape index: {}]
  %s4 = inlined_call_operand.<no memory space> [shape: f32[1], index: 4, kind: input, shape index: {}]
  %s5 = inlined_call_operand.hbm [shape: f32[16,512], index: 5, kind: output, shape index: {}]
  %s6 = sld [smem:[#allocation0]]
  $region69: #{tpu_custom_call.1} parent=0
    _
  %s8 = ssub.s32 1, %s6
  %s9 = scalar_select 0, %s8, %s6
  %10 = sst [smem:[#allocation2]] %s4
  $region1: #{tpu_custom_call.1} parent=0
    #allocation3 [shape = 'u8[32768]{0}', space=vmem, size = 0x8000, scoped, tag = 'input window, operand 0']
    #allocation4 [shape = 's32[2]{0}', space=sflag, size = 0x8, scoped, tag = 'scoped memory for tpu_custom_call.1']
    #allocation5 [shape = 's32[2]{0}', space=sflag, size = 0x8, scoped, tag = 'scoped memory for tpu_custom_call.1']
    #allocation6 [shape = 's32[2]{0}', space=sflag, size = 0x8, scoped, tag = 'scoped memory for tpu_custom_call.1']
    #allocation7 [shape = 'u8[512]{0}', space=smem, size = 0x200, scoped, tag = 'input window, operand 1, single buffered']
    #allocation8 [shape = 'u8[512]{0}', space=smem, size = 0x200, scoped, tag = 'input window, operand 2, single buffered']
    #allocation9 [shape = 's32[1]{0}', space=sflag, size = 0x4, scoped, tag = 'scoped memory for tpu_custom_call.1']
    #allocation10 [shape = 'u8[512]{0}', space=smem, size = 0x200, scoped, tag = 'input window, operand 3, single buffered']
    #allocation11 [shape = 'u8[32768]{0}', space=vmem, size = 0x8000, scoped, tag = 'output window, operand 0']
    %11 = vsyncpa [#allocation4], 0
    %s12 = scalar_lea.sflag [#allocation4], 1
    %13 = vsyncpa %s12, 0
    %14 = vsyncpa [#allocation6], 0
    %15 = vsyncpa [#allocation9], 0
    %16 = vsyncpa [#allocation5], 0
    %s17 = scalar_lea.sflag [#allocation5], 1
    %18 = vsyncpa %s17, 0
    loop: start=0, step=1, limit=4
    $region2: #{tpu_custom_call.1} parent=1 // loop_pre_header
      _
    $region3: #{tpu_custom_call.1} parent=1 // loop_header
      %s20 = sphi 0, %s24
      %p21 = scmp.ge.s32.totalorder %s20, 4
      %s30 = sphi 0, %s32
      %s33 = sphi 0, %s30
      %s34 = sphi 0, %s33
      %s50 = sphi 0, %s34
      %s54 = sphi 0, %s54
      %s56 = sphi 0, %s54
      %s57 = sphi 0, %s56
      %s71 = sphi 0, %s57
      %s75 = sphi 0, %s75
      %s77 = sphi 0, %s75
      %s78 = sphi 0, %s77
      %s92 = sphi 0, %s78
      %s96 = sphi 0, %s96
      %s98 = sphi 0, %s96
      %s99 = sphi 0, %s98
      %s113 = sphi 0, %s99
      %s117 = sphi 0, %s117
      %s119 = sphi 0, %s117
      %s120 = sphi 0, %s119
      %s134 = sphi 0, %s120
      %s140 = sphi 0, %s142
      %s143 = sphi 0, %s140
      %s144 = sphi 0, %s143
      %s160 = sphi 0, %s144
    $region4: #{tpu_custom_call.1} parent=1 // loop_header_branch
      %23 = sbr.rel (%p21) target = $region8
    $region5: #{tpu_custom_call.1} parent=1 // loop_body
      %s25 = ssub.s32 %s20, 1
      %s26 = ssub.s32 %s20, 2
      %s27 = sadd.s32 %s20, 1
      %s28 = ssub.s32 %s20, %s27
      %p29 = scmp.eq.s32.totalorder %s28, 0
      %s31 = sadd.s32 %s30, 1
      %s32 = scalar_select %p29, %s30, %s31
      %p35 = pneg %p29
      %p36 = scmp.eq.s32.totalorder %s20, 1
      %p37 = por %p35, %p36
      %p38 = scmp.ne.s32.totalorder %s30, %s33
      %p39 = scmp.eq.s32.totalorder %s20, 0
      %p40 = por %p38, %p39
      %p41 = scmp.ne.s32.totalorder %s30, %s33
      %p42 = scmp.eq.s32.totalorder %s25, 1
      %p43 = por %p41, %p42
      %p44 = scmp.ne.s32.totalorder %s33, %s34
      %p45 = scmp.eq.s32.totalorder %s25, 0
      %p46 = por %p44, %p45
      %p47 = scmp.ne.s32.totalorder %s33, %s34
      %p48 = scmp.eq.s32.totalorder %s26, 1
      %p49 = por %p47, %p48
      %p51 = scmp.ne.s32.totalorder %s34, %s50
      %p52 = scmp.eq.s32.totalorder %s26, 0
      %p53 = por %p51, %p52
      %s55 = sadd.s32 %s54, 1
      %p58 = scmp.eq.s32.totalorder %s20, 1
      %p59 = scmp.ne.s32.totalorder %s54, %s56
      %p60 = scmp.eq.s32.totalorder %s20, 0
      %p61 = por %p59, %p60
      %p62 = scmp.ne.s32.totalorder %s54, %s56
      %p63 = scmp.eq.s32.totalorder %s25, 1
      %p64 = por %p62, %p63
      %p65 = scmp.ne.s32.totalorder %s56, %s57
      %p66 = scmp.eq.s32.totalorder %s25, 0
      %p67 = por %p65, %p66
      %p68 = scmp.ne.s32.totalorder %s56, %s57
      %p69 = scmp.eq.s32.totalorder %s26, 1
      %p70 = por %p68, %p69
      %p72 = scmp.ne.s32.totalorder %s57, %s71
      %p73 = scmp.eq.s32.totalorder %s26, 0
      %p74 = por %p72, %p73
      %s76 = sadd.s32 %s75, 1
      %p79 = scmp.eq.s32.totalorder %s20, 1
      %p80 = scmp.ne.s32.totalorder %s75, %s77
      %p81 = scmp.eq.s32.totalorder %s20, 0
      %p82 = por %p80, %p81
      %p83 = scmp.ne.s32.totalorder %s75, %s77
      %p84 = scmp.eq.s32.totalorder %s25, 1
      %p85 = por %p83, %p84
      %p86 = scmp.ne.s32.totalorder %s77, %s78
      %p87 = scmp.eq.s32.totalorder %s25, 0
      %p88 = por %p86, %p87
      %p89 = scmp.ne.s32.totalorder %s77, %s78
      %p90 = scmp.eq.s32.totalorder %s26, 1
      %p91 = por %p89, %p90
      %p93 = scmp.ne.s32.totalorder %s78, %s92
      %p94 = scmp.eq.s32.totalorder %s26, 0
      %p95 = por %p93, %p94
      %s97 = sadd.s32 %s96, 1
      %p100 = scmp.eq.s32.totalorder %s20, 1
      %p101 = scmp.ne.s32.totalorder %s96, %s98
      %p102 = scmp.eq.s32.totalorder %s20, 0
      %p103 = por %p101, %p102
      %p104 = scmp.ne.s32.totalorder %s96, %s98
      %p105 = scmp.eq.s32.totalorder %s25, 1
      %p106 = por %p104, %p105
      %p107 = scmp.ne.s32.totalorder %s98, %s99
      %p108 = scmp.eq.s32.totalorder %s25, 0
      %p109 = por %p107, %p108
      %p110 = scmp.ne.s32.totalorder %s98, %s99
      %p111 = scmp.eq.s32.totalorder %s26, 1
      %p112 = por %p110, %p111
      %p114 = scmp.ne.s32.totalorder %s99, %s113
      %p115 = scmp.eq.s32.totalorder %s26, 0
      %p116 = por %p114, %p115
      %s118 = sadd.s32 %s117, 1
      %p121 = scmp.eq.s32.totalorder %s20, 1
      %p122 = scmp.ne.s32.totalorder %s117, %s119
      %p123 = scmp.eq.s32.totalorder %s20, 0
      %p124 = por %p122, %p123
      %p125 = scmp.ne.s32.totalorder %s117, %s119
      %p126 = scmp.eq.s32.totalorder %s25, 1
      %p127 = por %p125, %p126
      %p128 = scmp.ne.s32.totalorder %s119, %s120
      %p129 = scmp.eq.s32.totalorder %s25, 0
      %p130 = por %p128, %p129
      %p131 = scmp.ne.s32.totalorder %s119, %s120
      %p132 = scmp.eq.s32.totalorder %s26, 1
      %p133 = por %p131, %p132
      %p135 = scmp.ne.s32.totalorder %s120, %s134
      %p136 = scmp.eq.s32.totalorder %s26, 0
      %p137 = por %p135, %p136
      %s138 = ssub.s32 %s20, %s27
      %p139 = scmp.eq.s32.totalorder %s138, 0
      %s141 = sadd.s32 %s140, 1
      %s142 = scalar_select %p139, %s140, %s141
      %p145 = pneg %p139
      %p146 = scmp.eq.s32.totalorder %s20, 1
      %p147 = por %p145, %p146
      %p148 = scmp.ne.s32.totalorder %s140, %s143
      %p149 = scmp.eq.s32.totalorder %s20, 0
      %p150 = por %p148, %p149
      %p151 = scmp.ne.s32.totalorder %s140, %s143
      %p152 = scmp.eq.s32.totalorder %s25, 1
      %p153 = por %p151, %p152
      %p154 = scmp.ne.s32.totalorder %s143, %s144
      %p155 = scmp.eq.s32.totalorder %s25, 0
      %p156 = por %p154, %p155
      %p157 = scmp.ne.s32.totalorder %s143, %s144
      %p158 = scmp.eq.s32.totalorder %s26, 1
      %p159 = por %p157, %p158
      %p161 = scmp.ne.s32.totalorder %s144, %s160
      %p162 = scmp.eq.s32.totalorder %s26, 0
      %p163 = por %p161, %p162
      %p164 = scmp.le.s32.totalorder 1, %s20
      %p165 = scmp.lt.s32.totalorder %s20, 3
      %p166 = pnand %p164, %p165
      %p167 = pneg %p166
      // Predicated region
      $region9: #{tpu_custom_call.1} parent=5 // pred_check
        _
      $region10: #{tpu_custom_call.1} parent=5 // pred_check_branch
        %169 = sbr.rel (%p166) target = $region12
      $region11: #{tpu_custom_call.1} parent=5 // pred_region
        %s170 = ssub.s32 %s20, 1
        // Predicated region
        $region13: #{tpu_custom_call.1} parent=11 // pred_check
          %p171 = pneg %p67
        $region14: #{tpu_custom_call.1} parent=11 // pred_check_branch
          %173 = sbr.rel (%p171) target = $region16
        $region15: #{tpu_custom_call.1} parent=11 // pred_region
          %175 = vsyncadd [#allocation6], 0
          %s177 = sshll.u32 %s1, 4
          %s178 = int_to_ptr.vmem [resolvable:$true] %s177
          %180 = dma.vmem_to_smem %s178, 16, [#allocation7], [#allocation6]
        $region16: #{tpu_custom_call.1} parent=11 // pred_fallthru
          _
        // Predicated region
        $region17: #{tpu_custom_call.1} parent=11 // pred_check
          %p181 = pneg %p88
        $region18: #{tpu_custom_call.1} parent=11 // pred_check_branch
          %183 = sbr.rel (%p181) target = $region20
        $region19: #{tpu_custom_call.1} parent=11 // pred_region
          %185 = vsyncadd [#allocation9], 0
          %s187 = sshll.u32 %s2, 4
          %s188 = int_to_ptr.vmem [resolvable:$true] %s187
          %190 = dma.vmem_to_smem %s188, 16, [#allocation8], [#allocation9]
        $region20: #{tpu_custom_call.1} parent=11 // pred_fallthru
          _
        // Predicated region
        $region21: #{tpu_custom_call.1} parent=11 // pred_check
          %p191 = pneg %p109
        $region22: #{tpu_custom_call.1} parent=11 // pred_check_branch
          %193 = sbr.rel (%p191) target = $region24
        $region23: #{tpu_custom_call.1} parent=11 // pred_region
          %195 = vsyncadd [#allocation9], 0
          %s197 = sshll.u32 %s3, 4
          %s198 = int_to_ptr.vmem [resolvable:$true] %s197
          %200 = dma.vmem_to_smem %s198, 16, [#allocation10], [#allocation9]
        $region24: #{tpu_custom_call.1} parent=11 // pred_fallthru
          _
        // Predicated region
        $region25: #{tpu_custom_call.1} parent=11 // pred_check
          %p201 = pneg %p130
        $region26: #{tpu_custom_call.1} parent=11 // pred_check_branch
          %203 = sbr.rel (%p201) target = $region28
        $region27: #{tpu_custom_call.1} parent=11 // pred_region
          _
        $region28: #{tpu_custom_call.1} parent=11 // pred_fallthru
          _
      $region12: #{tpu_custom_call.1} parent=5 // pred_fallthru
        _
      %p204 = scmp.lt.s32.totalorder %s20, 2
      // Predicated region
      $region29: #{tpu_custom_call.1} parent=5 // pred_check
        %p205 = pneg %p204
      $region30: #{tpu_custom_call.1} parent=5 // pred_check_branch
        %207 = sbr.rel (%p205) target = $region32
      $region31: #{tpu_custom_call.1} parent=5 // pred_region
        // Predicated region
        $region33: #{tpu_custom_call.1} parent=31 // pred_check
          %p208 = pneg %p40
        $region34: #{tpu_custom_call.1} parent=31 // pred_check_branch
          %210 = sbr.rel (%p208) target = $region36
        $region35: #{tpu_custom_call.1} parent=31 // pred_region
          %s211 = sand.u32 %s30, 1
          %s212 = scalar_lea.sflag [#allocation4], %s211
          %s213 = sand.u32 %s30, 1
          %s214 = smul.addr %s213, 32
          %s215 = scalar_lea.vmem [#allocation3], %s214
          %217 = vsyncadd %s212, 0
          %s218 = smul.addr %s20, 4
          %s219 = smul.addr %s218, 8
          %s220 = scalar_lea.hbm %s0, %s219
          %s222 = sshll.u32 %s220, 4
          %s223 = int_to_ptr.hbm [resolvable:$true] %s222
          %s224 = sshll.u32 %s215, 4
          %s225 = int_to_ptr.vmem [resolvable:$true] %s224
          %227 = dma.hbm_to_vmem [thread:$0]  %s223, 512, %s225, %s212
        $region36: #{tpu_custom_call.1} parent=31 // pred_fallthru
          _
      $region32: #{tpu_custom_call.1} parent=5 // pred_fallthru
        _
      %p228 = scmp.le.s32.totalorder 1, %s20
      %p229 = scmp.lt.s32.totalorder %s20, 3
      %p230 = pnand %p228, %p229
      %p231 = pneg %p230
      // Predicated region
      $region37: #{tpu_custom_call.1} parent=5 // pred_check
        _
      $region38: #{tpu_custom_call.1} parent=5 // pred_check_branch
        %233 = sbr.rel (%p230) target = $region40
      $region39: #{tpu_custom_call.1} parent=5 // pred_region
        %s234 = ssub.s32 %s20, 1
        %s235 = sand.u32 %s33, 1
        %s236 = scalar_lea.sflag [#allocation4], %s235
        %s237 = sand.u32 %s33, 1
        %s238 = smul.addr %s237, 32
        %s239 = scalar_lea.vmem [#allocation3], %s238
        // Predicated region
        $region41: #{tpu_custom_call.1} parent=39 // pred_check
          %p240 = pneg %p46
        $region42: #{tpu_custom_call.1} parent=39 // pred_check_branch
          %242 = sbr.rel (%p240) target = $region44
        $region43: #{tpu_custom_call.1} parent=39 // pred_region
          %244 = dma.done %s236, 512
        $region44: #{tpu_custom_call.1} parent=39 // pred_fallthru
          _
        // Predicated region
        $region45: #{tpu_custom_call.1} parent=39 // pred_check
          %p245 = pneg %p67
        $region46: #{tpu_custom_call.1} parent=39 // pred_check_branch
          %247 = sbr.rel (%p245) target = $region48
        $region47: #{tpu_custom_call.1} parent=39 // pred_region
          %249 = dma.done [#allocation6], 16
        $region48: #{tpu_custom_call.1} parent=39 // pred_fallthru
          _
        // Predicated region
        $region49: #{tpu_custom_call.1} parent=39 // pred_check
          %p250 = pneg %p88
        $region50: #{tpu_custom_call.1} parent=39 // pred_check_branch
          %252 = sbr.rel (%p250) target = $region52
        $region51: #{tpu_custom_call.1} parent=39 // pred_region
          %254 = dma.done [#allocation9], 16
        $region52: #{tpu_custom_call.1} parent=39 // pred_fallthru
          _
        // Predicated region
        $region53: #{tpu_custom_call.1} parent=39 // pred_check
          %p255 = pneg %p109
        $region54: #{tpu_custom_call.1} parent=39 // pred_check_branch
          %257 = sbr.rel (%p255) target = $region56
        $region55: #{tpu_custom_call.1} parent=39 // pred_region
          %259 = dma.done [#allocation9], 16
        $region56: #{tpu_custom_call.1} parent=39 // pred_fallthru
          _
        %260 = sfence
        %s261 = sand.u32 %s33, 1
        %s262 = scalar_lea.sflag [#allocation4], %s261
        %s263 = sand.u32 %s33, 1
        %s264 = smul.addr %s263, 32
        %s265 = scalar_lea.vmem [#allocation3], %s264
        %p266 = pneg %p46
        %p267 = pneg %p43
        %p268 = pneg %p67
        %p269 = pneg %p64
        %p270 = pneg %p88
        %p271 = pneg %p85
        %p272 = pneg %p109
        %p273 = pneg %p106
        %p274 = pneg %p130
        %p275 = pneg %p127
        %p276 = pneg %p156
        %p277 = pneg %p153
        %s278 = sand.u32 %s143, 1
        %s279 = scalar_lea.sflag [#allocation5], %s278
        %s280 = sand.u32 %s143, 1
        %s281 = smul.addr %s280, 32
        %s282 = scalar_lea.vmem [#allocation11], %s281
        %s283 = sld [smem:[#allocation7]]
        %s284 = sld [smem:[#allocation7 + $0x1]]
        %s285 = sld [smem:[#allocation7 + $0x2]]
        %s286 = sld [smem:[#allocation7 + $0x3]]
        %s287 = sld [smem:[#allocation7 + $0x4]]
        %s288 = sld [smem:[#allocation7 + $0x5]]
        %s289 = sld [smem:[#allocation7 + $0x6]]
        %s290 = sld [smem:[#allocation7 + $0x7]]
        %s291 = sld [smem:[#allocation7 + $0x8]]
        %s292 = sld [smem:[#allocation7 + $0x9]]
        %s293 = sld [smem:[#allocation7 + $0xa]]
        %s294 = sld [smem:[#allocation7 + $0xb]]
        %s295 = sld [smem:[#allocation7 + $0xc]]
        %s296 = sld [smem:[#allocation7 + $0xd]]
        %s297 = sld [smem:[#allocation7 + $0xe]]
        %s298 = sld [smem:[#allocation7 + $0xf]]
        %s299 = sld [smem:[#allocation7 + $0x10]]
        %s300 = sld [smem:[#allocation7 + $0x11]]
        %s301 = sld [smem:[#allocation7 + $0x12]]
        %s302 = sld [smem:[#allocation7 + $0x13]]
        %s303 = sld [smem:[#allocation7 + $0x14]]
        %s304 = sld [smem:[#allocation7 + $0x15]]
        %s305 = sld [smem:[#allocation7 + $0x16]]
        %s306 = sld [smem:[#allocation7 + $0x17]]
        %s307 = sld [smem:[#allocation7 + $0x18]]
        %s308 = sld [smem:[#allocation7 + $0x19]]
        %s309 = sld [smem:[#allocation7 + $0x1a]]
        %s310 = sld [smem:[#allocation7 + $0x1b]]
        %s311 = sld [smem:[#allocation7 + $0x1c]]
        %s312 = sld [smem:[#allocation7 + $0x1d]]
        %s313 = sld [smem:[#allocation7 + $0x1e]]
        %s314 = sld [smem:[#allocation7 + $0x1f]]
        %s315 = sld [smem:[#allocation8]]
        %s316 = sld [smem:[#allocation8 + $0x1]]
        %s317 = sld [smem:[#allocation8 + $0x2]]
        %s318 = sld [smem:[#allocation8 + $0x3]]
        %s319 = sld [smem:[#allocation8 + $0x4]]
        %s320 = sld [smem:[#allocation8 + $0x5]]
        %s321 = sld [smem:[#allocation8 + $0x6]]
        %s322 = sld [smem:[#allocation8 + $0x7]]
        %s323 = sld [smem:[#allocation8 + $0x8]]
        %s324 = sld [smem:[#allocation8 + $0x9]]
        %s325 = sld [smem:[#allocation8 + $0xa]]
        %s326 = sld [smem:[#allocation8 + $0xb]]
        %s327 = sld [smem:[#allocation8 + $0xc]]
        %s328 = sld [smem:[#allocation8 + $0xd]]
        %s329 = sld [smem:[#allocation8 + $0xe]]
        %s330 = sld [smem:[#allocation8 + $0xf]]
        %s331 = sld [smem:[#allocation8 + $0x10]]
        %s332 = sld [smem:[#allocation8 + $0x11]]
        %s333 = sld [smem:[#allocation8 + $0x12]]
        %s334 = sld [smem:[#allocation8 + $0x13]]
        %s335 = sld [smem:[#allocation8 + $0x14]]
        %s336 = sld [smem:[#allocation8 + $0x15]]
        %s337 = sld [smem:[#allocation8 + $0x16]]
        %s338 = sld [smem:[#allocation8 + $0x17]]
        %s339 = sld [smem:[#allocation8 + $0x18]]
        %s340 = sld [smem:[#allocation8 + $0x19]]
        %s341 = sld [smem:[#allocation8 + $0x1a]]
        %s342 = sld [smem:[#allocation8 + $0x1b]]
        %s343 = sld [smem:[#allocation8 + $0x1c]]
        %s344 = sld [smem:[#allocation8 + $0x1d]]
        %s345 = sld [smem:[#allocation8 + $0x1e]]
        %s346 = sld [smem:[#allocation8 + $0x1f]]
        %s347 = sld [smem:[#allocation10]]
        %s348 = sld [smem:[#allocation10 + $0x1]]
        %s349 = sld [smem:[#allocation10 + $0x2]]
        %s350 = sld [smem:[#allocation10 + $0x3]]
        %s351 = sld [smem:[#allocation10 + $0x4]]
        %s352 = sld [smem:[#allocation10 + $0x5]]
        %s353 = sld [smem:[#allocation10 + $0x6]]
        %s354 = sld [smem:[#allocation10 + $0x7]]
        %s355 = sld [smem:[#allocation10 + $0x8]]
        %s356 = sld [smem:[#allocation10 + $0x9]]
        %s357 = sld [smem:[#allocation10 + $0xa]]
        %s358 = sld [smem:[#allocation10 + $0xb]]
        %s359 = sld [smem:[#allocation10 + $0xc]]
        %s360 = sld [smem:[#allocation10 + $0xd]]
        %s361 = sld [smem:[#allocation10 + $0xe]]
        %s362 = sld [smem:[#allocation10 + $0xf]]
        %s363 = sld [smem:[#allocation10 + $0x10]]
        %s364 = sld [smem:[#allocation10 + $0x11]]
        %s365 = sld [smem:[#allocation10 + $0x12]]
        %s366 = sld [smem:[#allocation10 + $0x13]]
        %s367 = sld [smem:[#allocation10 + $0x14]]
        %s368 = sld [smem:[#allocation10 + $0x15]]
        %s369 = sld [smem:[#allocation10 + $0x16]]
        %s370 = sld [smem:[#allocation10 + $0x17]]
        %s371 = sld [smem:[#allocation10 + $0x18]]
        %s372 = sld [smem:[#allocation10 + $0x19]]
        %s373 = sld [smem:[#allocation10 + $0x1a]]
        %s374 = sld [smem:[#allocation10 + $0x1b]]
        %s375 = sld [smem:[#allocation10 + $0x1c]]
        %s376 = sld [smem:[#allocation10 + $0x1d]]
        %s377 = sld [smem:[#allocation10 + $0x1e]]
        %s378 = sld [smem:[#allocation10 + $0x1f]]
        %s379 = sld [smem:[#allocation2]]
        %s380 = smul.u32 0, 4
        %s381 = smul.addr %s380, 8
        %s382 = scalar_lea.vmem %s239, %s381 [#allocation3]
        %v383 = vld [vmem:[%s382] sm:$0xff]
        %v384 = vld [vmem:[%s382 + $0x8] sm:$0xff]
        %v385 = vld [vmem:[%s382 + $0x10] sm:$0xff]
        %v386 = vld [vmem:[%s382 + $0x18] sm:$0xff]
        %v387 = vstv %s283
        %v388 = vmul.f32 %v383, %v387
        %v389 = vmul.f32 %v384, %v387
        %v390 = vmul.f32 %v385, %v387
        %v391 = vmul.f32 %v386, %v387
        %v392 = vstv %s315
        %v393 = vadd.f32 %v388, %v392
        %v394 = vadd.f32 %v389, %v392
        %v395 = vadd.f32 %v390, %v392
        %v396 = vadd.f32 %v391, %v392
        %v397 = vmax.f32 %v393, 0.0
        %v398 = vmax.f32 %v394, 0.0
        %v399 = vmax.f32 %v395, 0.0
        %v400 = vmax.f32 %v396, 0.0
        %v401 = vstv %s347
        %v402 = vmul.f32 %v401, %v397
        %v403 = vmul.f32 %v401, %v398
        %v404 = vmul.f32 %v401, %v399
        %v405 = vmul.f32 %v401, %v400
        %v406 = vadd.f32 %v402, 0.0
        %v407 = vadd.f32 %v403, 0.0
        %v408 = vadd.f32 %v404, 0.0
        %v409 = vadd.f32 %v405, 0.0
        %v410 = vstv %s284
        %v411 = vmul.f32 %v383, %v410
        %v412 = vmul.f32 %v384, %v410
        %v413 = vmul.f32 %v385, %v410
        %v414 = vmul.f32 %v386, %v410
        %v415 = vstv %s316
        %v416 = vadd.f32 %v411, %v415
        %v417 = vadd.f32 %v412, %v415
        %v418 = vadd.f32 %v413, %v415
        %v419 = vadd.f32 %v414, %v415
        %v420 = vmax.f32 %v416, 0.0
        %v421 = vmax.f32 %v417, 0.0
        %v422 = vmax.f32 %v418, 0.0
        %v423 = vmax.f32 %v419, 0.0
        %v424 = vstv %s348
        %v425 = vmul.f32 %v424, %v420
        %v426 = vmul.f32 %v424, %v421
        %v427 = vmul.f32 %v424, %v422
        %v428 = vmul.f32 %v424, %v423
        %v429 = vadd.f32 %v425, 0.0
        %v430 = vadd.f32 %v426, 0.0
        %v431 = vadd.f32 %v427, 0.0
        %v432 = vadd.f32 %v428, 0.0
        %v433 = vstv %s285
        %v434 = vmul.f32 %v383, %v433
        %v435 = vmul.f32 %v384, %v433
        %v436 = vmul.f32 %v385, %v433
        %v437 = vmul.f32 %v386, %v433
        %v438 = vstv %s317
        %v439 = vadd.f32 %v434, %v438
        %v440 = vadd.f32 %v435, %v438
        %v441 = vadd.f32 %v436, %v438
        %v442 = vadd.f32 %v437, %v438
        %v443 = vmax.f32 %v439, 0.0
        %v444 = vmax.f32 %v440, 0.0
        %v445 = vmax.f32 %v441, 0.0
        %v446 = vmax.f32 %v442, 0.0
        %v447 = vstv %s349
        %v448 = vmul.f32 %v447, %v443
        %v449 = vmul.f32 %v447, %v444
        %v450 = vmul.f32 %v447, %v445
        %v451 = vmul.f32 %v447, %v446
        %v452 = vadd.f32 %v448, 0.0
        %v453 = vadd.f32 %v449, 0.0
        %v454 = vadd.f32 %v450, 0.0
        %v455 = vadd.f32 %v451, 0.0
        %v456 = vstv %s286
        %v457 = vmul.f32 %v383, %v456
        %v458 = vmul.f32 %v384, %v456
        %v459 = vmul.f32 %v385, %v456
        %v460 = vmul.f32 %v386, %v456
        %v461 = vstv %s318
        %v462 = vadd.f32 %v457, %v461
        %v463 = vadd.f32 %v458, %v461
        %v464 = vadd.f32 %v459, %v461
        %v465 = vadd.f32 %v460, %v461
        %v466 = vmax.f32 %v462, 0.0
        %v467 = vmax.f32 %v463, 0.0
        %v468 = vmax.f32 %v464, 0.0
        %v469 = vmax.f32 %v465, 0.0
        %v470 = vstv %s350
        %v471 = vmul.f32 %v470, %v466
        %v472 = vmul.f32 %v470, %v467
        %v473 = vmul.f32 %v470, %v468
        %v474 = vmul.f32 %v470, %v469
        %v475 = vadd.f32 %v471, 0.0
        %v476 = vadd.f32 %v472, 0.0
        %v477 = vadd.f32 %v473, 0.0
        %v478 = vadd.f32 %v474, 0.0
        %v479 = vstv %s287
        %v480 = vmul.f32 %v383, %v479
        %v481 = vmul.f32 %v384, %v479
        %v482 = vmul.f32 %v385, %v479
        %v483 = vmul.f32 %v386, %v479
        %v484 = vstv %s319
        %v485 = vadd.f32 %v480, %v484
        %v486 = vadd.f32 %v481, %v484
        %v487 = vadd.f32 %v482, %v484
        %v488 = vadd.f32 %v483, %v484
        %v489 = vmax.f32 %v485, 0.0
        %v490 = vmax.f32 %v486, 0.0
        %v491 = vmax.f32 %v487, 0.0
        %v492 = vmax.f32 %v488, 0.0
        %v493 = vstv %s351
        %v494 = vmul.f32 %v493, %v489
        %v495 = vmul.f32 %v493, %v490
        %v496 = vmul.f32 %v493, %v491
        %v497 = vmul.f32 %v493, %v492
        %v498 = vadd.f32 %v406, %v494
        %v499 = vadd.f32 %v407, %v495
        %v500 = vadd.f32 %v408, %v496
        %v501 = vadd.f32 %v409, %v497
        %v502 = vstv %s288
        %v503 = vmul.f32 %v383, %v502
        %v504 = vmul.f32 %v384, %v502
        %v505 = vmul.f32 %v385, %v502
        %v506 = vmul.f32 %v386, %v502
        %v507 = vstv %s320
        %v508 = vadd.f32 %v503, %v507
        %v509 = vadd.f32 %v504, %v507
        %v510 = vadd.f32 %v505, %v507
        %v511 = vadd.f32 %v506, %v507
        %v512 = vmax.f32 %v508, 0.0
        %v513 = vmax.f32 %v509, 0.0
        %v514 = vmax.f32 %v510, 0.0
        %v515 = vmax.f32 %v511, 0.0
        %v516 = vstv %s352
        %v517 = vmul.f32 %v516, %v512
        %v518 = vmul.f32 %v516, %v513
        %v519 = vmul.f32 %v516, %v514
        %v520 = vmul.f32 %v516, %v515
        %v521 = vadd.f32 %v429, %v517
        %v522 = vadd.f32 %v430, %v518
        %v523 = vadd.f32 %v431, %v519
        %v524 = vadd.f32 %v432, %v520
        %v525 = vstv %s289
        %v526 = vmul.f32 %v383, %v525
        %v527 = vmul.f32 %v384, %v525
        %v528 = vmul.f32 %v385, %v525
        %v529 = vmul.f32 %v386, %v525
        %v530 = vstv %s321
        %v531 = vadd.f32 %v526, %v530
        %v532 = vadd.f32 %v527, %v530
        %v533 = vadd.f32 %v528, %v530
        %v534 = vadd.f32 %v529, %v530
        %v535 = vmax.f32 %v531, 0.0
        %v536 = vmax.f32 %v532, 0.0
        %v537 = vmax.f32 %v533, 0.0
        %v538 = vmax.f32 %v534, 0.0
        %v539 = vstv %s353
        %v540 = vmul.f32 %v539, %v535
        %v541 = vmul.f32 %v539, %v536
        %v542 = vmul.f32 %v539, %v537
        %v543 = vmul.f32 %v539, %v538
        %v544 = vadd.f32 %v452, %v540
        %v545 = vadd.f32 %v453, %v541
        %v546 = vadd.f32 %v454, %v542
        %v547 = vadd.f32 %v455, %v543
        %v548 = vstv %s290
        %v549 = vmul.f32 %v383, %v548
        %v550 = vmul.f32 %v384, %v548
        %v551 = vmul.f32 %v385, %v548
        %v552 = vmul.f32 %v386, %v548
        %v553 = vstv %s322
        %v554 = vadd.f32 %v549, %v553
        %v555 = vadd.f32 %v550, %v553
        %v556 = vadd.f32 %v551, %v553
        %v557 = vadd.f32 %v552, %v553
        %v558 = vmax.f32 %v554, 0.0
        %v559 = vmax.f32 %v555, 0.0
        %v560 = vmax.f32 %v556, 0.0
        %v561 = vmax.f32 %v557, 0.0
        %v562 = vstv %s354
        %v563 = vmul.f32 %v562, %v558
        %v564 = vmul.f32 %v562, %v559
        %v565 = vmul.f32 %v562, %v560
        %v566 = vmul.f32 %v562, %v561
        %v567 = vadd.f32 %v475, %v563
        %v568 = vadd.f32 %v476, %v564
        %v569 = vadd.f32 %v477, %v565
        %v570 = vadd.f32 %v478, %v566
        %v571 = vstv %s291
        %v572 = vmul.f32 %v383, %v571
        %v573 = vmul.f32 %v384, %v571
        %v574 = vmul.f32 %v385, %v571
        %v575 = vmul.f32 %v386, %v571
        %v576 = vstv %s323
        %v577 = vadd.f32 %v572, %v576
        %v578 = vadd.f32 %v573, %v576
        %v579 = vadd.f32 %v574, %v576
        %v580 = vadd.f32 %v575, %v576
        %v581 = vmax.f32 %v577, 0.0
        %v582 = vmax.f32 %v578, 0.0
        %v583 = vmax.f32 %v579, 0.0
        %v584 = vmax.f32 %v580, 0.0
        %v585 = vstv %s355
        %v586 = vmul.f32 %v585, %v581
        %v587 = vmul.f32 %v585, %v582
        %v588 = vmul.f32 %v585, %v583
        %v589 = vmul.f32 %v585, %v584
        %v590 = vadd.f32 %v498, %v586
        %v591 = vadd.f32 %v499, %v587
        %v592 = vadd.f32 %v500, %v588
        %v593 = vadd.f32 %v501, %v589
        %v594 = vstv %s292
        %v595 = vmul.f32 %v383, %v594
        %v596 = vmul.f32 %v384, %v594
        %v597 = vmul.f32 %v385, %v594
        %v598 = vmul.f32 %v386, %v594
        %v599 = vstv %s324
        %v600 = vadd.f32 %v595, %v599
        %v601 = vadd.f32 %v596, %v599
        %v602 = vadd.f32 %v597, %v599
        %v603 = vadd.f32 %v598, %v599
        %v604 = vmax.f32 %v600, 0.0
        %v605 = vmax.f32 %v601, 0.0
        %v606 = vmax.f32 %v602, 0.0
        %v607 = vmax.f32 %v603, 0.0
        %v608 = vstv %s356
        %v609 = vmul.f32 %v608, %v604
        %v610 = vmul.f32 %v608, %v605
        %v611 = vmul.f32 %v608, %v606
        %v612 = vmul.f32 %v608, %v607
        %v613 = vadd.f32 %v521, %v609
        %v614 = vadd.f32 %v522, %v610
        %v615 = vadd.f32 %v523, %v611
        %v616 = vadd.f32 %v524, %v612
        %v617 = vstv %s293
        %v618 = vmul.f32 %v383, %v617
        %v619 = vmul.f32 %v384, %v617
        %v620 = vmul.f32 %v385, %v617
        %v621 = vmul.f32 %v386, %v617
        %v622 = vstv %s325
        %v623 = vadd.f32 %v618, %v622
        %v624 = vadd.f32 %v619, %v622
        %v625 = vadd.f32 %v620, %v622
        %v626 = vadd.f32 %v621, %v622
        %v627 = vmax.f32 %v623, 0.0
        %v628 = vmax.f32 %v624, 0.0
        %v629 = vmax.f32 %v625, 0.0
        %v630 = vmax.f32 %v626, 0.0
        %v631 = vstv %s357
        %v632 = vmul.f32 %v631, %v627
        %v633 = vmul.f32 %v631, %v628
        %v634 = vmul.f32 %v631, %v629
        %v635 = vmul.f32 %v631, %v630
        %v636 = vadd.f32 %v544, %v632
        %v637 = vadd.f32 %v545, %v633
        %v638 = vadd.f32 %v546, %v634
        %v639 = vadd.f32 %v547, %v635
        %v640 = vstv %s294
        %v641 = vmul.f32 %v383, %v640
        %v642 = vmul.f32 %v384, %v640
        %v643 = vmul.f32 %v385, %v640
        %v644 = vmul.f32 %v386, %v640
        %v645 = vstv %s326
        %v646 = vadd.f32 %v641, %v645
        %v647 = vadd.f32 %v642, %v645
        %v648 = vadd.f32 %v643, %v645
        %v649 = vadd.f32 %v644, %v645
        %v650 = vmax.f32 %v646, 0.0
        %v651 = vmax.f32 %v647, 0.0
        %v652 = vmax.f32 %v648, 0.0
        %v653 = vmax.f32 %v649, 0.0
        %v654 = vstv %s358
        %v655 = vmul.f32 %v654, %v650
        %v656 = vmul.f32 %v654, %v651
        %v657 = vmul.f32 %v654, %v652
        %v658 = vmul.f32 %v654, %v653
        %v659 = vadd.f32 %v567, %v655
        %v660 = vadd.f32 %v568, %v656
        %v661 = vadd.f32 %v569, %v657
        %v662 = vadd.f32 %v570, %v658
        %v663 = vstv %s295
        %v664 = vmul.f32 %v383, %v663
        %v665 = vmul.f32 %v384, %v663
        %v666 = vmul.f32 %v385, %v663
        %v667 = vmul.f32 %v386, %v663
        %v668 = vstv %s327
        %v669 = vadd.f32 %v664, %v668
        %v670 = vadd.f32 %v665, %v668
        %v671 = vadd.f32 %v666, %v668
        %v672 = vadd.f32 %v667, %v668
        %v673 = vmax.f32 %v669, 0.0
        %v674 = vmax.f32 %v670, 0.0
        %v675 = vmax.f32 %v671, 0.0
        %v676 = vmax.f32 %v672, 0.0
        %v677 = vstv %s359
        %v678 = vmul.f32 %v677, %v673
        %v679 = vmul.f32 %v677, %v674
        %v680 = vmul.f32 %v677, %v675
        %v681 = vmul.f32 %v677, %v676
        %v682 = vadd.f32 %v590, %v678
        %v683 = vadd.f32 %v591, %v679
        %v684 = vadd.f32 %v592, %v680
        %v685 = vadd.f32 %v593, %v681
        %v686 = vstv %s296
        %v687 = vmul.f32 %v383, %v686
        %v688 = vmul.f32 %v384, %v686
        %v689 = vmul.f32 %v385, %v686
        %v690 = vmul.f32 %v386, %v686
        %v691 = vstv %s328
        %v692 = vadd.f32 %v687, %v691
        %v693 = vadd.f32 %v688, %v691
        %v694 = vadd.f32 %v689, %v691
        %v695 = vadd.f32 %v690, %v691
        %v696 = vmax.f32 %v692, 0.0
        %v697 = vmax.f32 %v693, 0.0
        %v698 = vmax.f32 %v694, 0.0
        %v699 = vmax.f32 %v695, 0.0
        %v700 = vstv %s360
        %v701 = vmul.f32 %v700, %v696
        %v702 = vmul.f32 %v700, %v697
        %v703 = vmul.f32 %v700, %v698
        %v704 = vmul.f32 %v700, %v699
        %v705 = vadd.f32 %v613, %v701
        %v706 = vadd.f32 %v614, %v702
        %v707 = vadd.f32 %v615, %v703
        %v708 = vadd.f32 %v616, %v704
        %v709 = vstv %s297
        %v710 = vmul.f32 %v383, %v709
        %v711 = vmul.f32 %v384, %v709
        %v712 = vmul.f32 %v385, %v709
        %v713 = vmul.f32 %v386, %v709
        %v714 = vstv %s329
        %v715 = vadd.f32 %v710, %v714
        %v716 = vadd.f32 %v711, %v714
        %v717 = vadd.f32 %v712, %v714
        %v718 = vadd.f32 %v713, %v714
        %v719 = vmax.f32 %v715, 0.0
        %v720 = vmax.f32 %v716, 0.0
        %v721 = vmax.f32 %v717, 0.0
        %v722 = vmax.f32 %v718, 0.0
        %v723 = vstv %s361
        %v724 = vmul.f32 %v723, %v719
        %v725 = vmul.f32 %v723, %v720
        %v726 = vmul.f32 %v723, %v721
        %v727 = vmul.f32 %v723, %v722
        %v728 = vadd.f32 %v636, %v724
        %v729 = vadd.f32 %v637, %v725
        %v730 = vadd.f32 %v638, %v726
        %v731 = vadd.f32 %v639, %v727
        %v732 = vstv %s298
        %v733 = vmul.f32 %v383, %v732
        %v734 = vmul.f32 %v384, %v732
        %v735 = vmul.f32 %v385, %v732
        %v736 = vmul.f32 %v386, %v732
        %v737 = vstv %s330
        %v738 = vadd.f32 %v733, %v737
        %v739 = vadd.f32 %v734, %v737
        %v740 = vadd.f32 %v735, %v737
        %v741 = vadd.f32 %v736, %v737
        %v742 = vmax.f32 %v738, 0.0
        %v743 = vmax.f32 %v739, 0.0
        %v744 = vmax.f32 %v740, 0.0
        %v745 = vmax.f32 %v741, 0.0
        %v746 = vstv %s362
        %v747 = vmul.f32 %v746, %v742
        %v748 = vmul.f32 %v746, %v743
        %v749 = vmul.f32 %v746, %v744
        %v750 = vmul.f32 %v746, %v745
        %v751 = vadd.f32 %v659, %v747
        %v752 = vadd.f32 %v660, %v748
        %v753 = vadd.f32 %v661, %v749
        %v754 = vadd.f32 %v662, %v750
        %v755 = vstv %s299
        %v756 = vmul.f32 %v383, %v755
        %v757 = vmul.f32 %v384, %v755
        %v758 = vmul.f32 %v385, %v755
        %v759 = vmul.f32 %v386, %v755
        %v760 = vstv %s331
        %v761 = vadd.f32 %v756, %v760
        %v762 = vadd.f32 %v757, %v760
        %v763 = vadd.f32 %v758, %v760
        %v764 = vadd.f32 %v759, %v760
        %v765 = vmax.f32 %v761, 0.0
        %v766 = vmax.f32 %v762, 0.0
        %v767 = vmax.f32 %v763, 0.0
        %v768 = vmax.f32 %v764, 0.0
        %v769 = vstv %s363
        %v770 = vmul.f32 %v769, %v765
        %v771 = vmul.f32 %v769, %v766
        %v772 = vmul.f32 %v769, %v767
        %v773 = vmul.f32 %v769, %v768
        %v774 = vadd.f32 %v682, %v770
        %v775 = vadd.f32 %v683, %v771
        %v776 = vadd.f32 %v684, %v772
        %v777 = vadd.f32 %v685, %v773
        %v778 = vstv %s300
        %v779 = vmul.f32 %v383, %v778
        %v780 = vmul.f32 %v384, %v778
        %v781 = vmul.f32 %v385, %v778
        %v782 = vmul.f32 %v386, %v778
        %v783 = vstv %s332
        %v784 = vadd.f32 %v779, %v783
        %v785 = vadd.f32 %v780, %v783
        %v786 = vadd.f32 %v781, %v783
        %v787 = vadd.f32 %v782, %v783
        %v788 = vmax.f32 %v784, 0.0
        %v789 = vmax.f32 %v785, 0.0
        %v790 = vmax.f32 %v786, 0.0
        %v791 = vmax.f32 %v787, 0.0
        %v792 = vstv %s364
        %v793 = vmul.f32 %v792, %v788
        %v794 = vmul.f32 %v792, %v789
        %v795 = vmul.f32 %v792, %v790
        %v796 = vmul.f32 %v792, %v791
        %v797 = vadd.f32 %v705, %v793
        %v798 = vadd.f32 %v706, %v794
        %v799 = vadd.f32 %v707, %v795
        %v800 = vadd.f32 %v708, %v796
        %v801 = vstv %s301
        %v802 = vmul.f32 %v383, %v801
        %v803 = vmul.f32 %v384, %v801
        %v804 = vmul.f32 %v385, %v801
        %v805 = vmul.f32 %v386, %v801
        %v806 = vstv %s333
        %v807 = vadd.f32 %v802, %v806
        %v808 = vadd.f32 %v803, %v806
        %v809 = vadd.f32 %v804, %v806
        %v810 = vadd.f32 %v805, %v806
        %v811 = vmax.f32 %v807, 0.0
        %v812 = vmax.f32 %v808, 0.0
        %v813 = vmax.f32 %v809, 0.0
        %v814 = vmax.f32 %v810, 0.0
        %v815 = vstv %s365
        %v816 = vmul.f32 %v815, %v811
        %v817 = vmul.f32 %v815, %v812
        %v818 = vmul.f32 %v815, %v813
        %v819 = vmul.f32 %v815, %v814
        %v820 = vadd.f32 %v728, %v816
        %v821 = vadd.f32 %v729, %v817
        %v822 = vadd.f32 %v730, %v818
        %v823 = vadd.f32 %v731, %v819
        %v824 = vstv %s302
        %v825 = vmul.f32 %v383, %v824
        %v826 = vmul.f32 %v384, %v824
        %v827 = vmul.f32 %v385, %v824
        %v828 = vmul.f32 %v386, %v824
        %v829 = vstv %s334
        %v830 = vadd.f32 %v825, %v829
        %v831 = vadd.f32 %v826, %v829
        %v832 = vadd.f32 %v827, %v829
        %v833 = vadd.f32 %v828, %v829
        %v834 = vmax.f32 %v830, 0.0
        %v835 = vmax.f32 %v831, 0.0
        %v836 = vmax.f32 %v832, 0.0
        %v837 = vmax.f32 %v833, 0.0
        %v838 = vstv %s366
        %v839 = vmul.f32 %v838, %v834
        %v840 = vmul.f32 %v838, %v835
        %v841 = vmul.f32 %v838, %v836
        %v842 = vmul.f32 %v838, %v837
        %v843 = vadd.f32 %v751, %v839
        %v844 = vadd.f32 %v752, %v840
        %v845 = vadd.f32 %v753, %v841
        %v846 = vadd.f32 %v754, %v842
        %v847 = vstv %s303
        %v848 = vmul.f32 %v383, %v847
        %v849 = vmul.f32 %v384, %v847
        %v850 = vmul.f32 %v385, %v847
        %v851 = vmul.f32 %v386, %v847
        %v852 = vstv %s335
        %v853 = vadd.f32 %v848, %v852
        %v854 = vadd.f32 %v849, %v852
        %v855 = vadd.f32 %v850, %v852
        %v856 = vadd.f32 %v851, %v852
        %v857 = vmax.f32 %v853, 0.0
        %v858 = vmax.f32 %v854, 0.0
        %v859 = vmax.f32 %v855, 0.0
        %v860 = vmax.f32 %v856, 0.0
        %v861 = vstv %s367
        %v862 = vmul.f32 %v861, %v857
        %v863 = vmul.f32 %v861, %v858
        %v864 = vmul.f32 %v861, %v859
        %v865 = vmul.f32 %v861, %v860
        %v866 = vadd.f32 %v774, %v862
        %v867 = vadd.f32 %v775, %v863
        %v868 = vadd.f32 %v776, %v864
        %v869 = vadd.f32 %v777, %v865
        %v870 = vstv %s304
        %v871 = vmul.f32 %v383, %v870
        %v872 = vmul.f32 %v384, %v870
        %v873 = vmul.f32 %v385, %v870
        %v874 = vmul.f32 %v386, %v870
        %v875 = vstv %s336
        %v876 = vadd.f32 %v871, %v875
        %v877 = vadd.f32 %v872, %v875
        %v878 = vadd.f32 %v873, %v875
        %v879 = vadd.f32 %v874, %v875
        %v880 = vmax.f32 %v876, 0.0
        %v881 = vmax.f32 %v877, 0.0
        %v882 = vmax.f32 %v878, 0.0
        %v883 = vmax.f32 %v879, 0.0
        %v884 = vstv %s368
        %v885 = vmul.f32 %v884, %v880
        %v886 = vmul.f32 %v884, %v881
        %v887 = vmul.f32 %v884, %v882
        %v888 = vmul.f32 %v884, %v883
        %v889 = vadd.f32 %v797, %v885
        %v890 = vadd.f32 %v798, %v886
        %v891 = vadd.f32 %v799, %v887
        %v892 = vadd.f32 %v800, %v888
        %v893 = vstv %s305
        %v894 = vmul.f32 %v383, %v893
        %v895 = vmul.f32 %v384, %v893
        %v896 = vmul.f32 %v385, %v893
        %v897 = vmul.f32 %v386, %v893
        %v898 = vstv %s337
        %v899 = vadd.f32 %v894, %v898
        %v900 = vadd.f32 %v895, %v898
        %v901 = vadd.f32 %v896, %v898
        %v902 = vadd.f32 %v897, %v898
        %v903 = vmax.f32 %v899, 0.0
        %v904 = vmax.f32 %v900, 0.0
        %v905 = vmax.f32 %v901, 0.0
        %v906 = vmax.f32 %v902, 0.0
        %v907 = vstv %s369
        %v908 = vmul.f32 %v907, %v903
        %v909 = vmul.f32 %v907, %v904
        %v910 = vmul.f32 %v907, %v905
        %v911 = vmul.f32 %v907, %v906
        %v912 = vadd.f32 %v820, %v908
        %v913 = vadd.f32 %v821, %v909
        %v914 = vadd.f32 %v822, %v910
        %v915 = vadd.f32 %v823, %v911
        %v916 = vstv %s306
        %v917 = vmul.f32 %v383, %v916
        %v918 = vmul.f32 %v384, %v916
        %v919 = vmul.f32 %v385, %v916
        %v920 = vmul.f32 %v386, %v916
        %v921 = vstv %s338
        %v922 = vadd.f32 %v917, %v921
        %v923 = vadd.f32 %v918, %v921
        %v924 = vadd.f32 %v919, %v921
        %v925 = vadd.f32 %v920, %v921
        %v926 = vmax.f32 %v922, 0.0
        %v927 = vmax.f32 %v923, 0.0
        %v928 = vmax.f32 %v924, 0.0
        %v929 = vmax.f32 %v925, 0.0
        %v930 = vstv %s370
        %v931 = vmul.f32 %v930, %v926
        %v932 = vmul.f32 %v930, %v927
        %v933 = vmul.f32 %v930, %v928
        %v934 = vmul.f32 %v930, %v929
        %v935 = vadd.f32 %v843, %v931
        %v936 = vadd.f32 %v844, %v932
        %v937 = vadd.f32 %v845, %v933
        %v938 = vadd.f32 %v846, %v934
        %v939 = vstv %s307
        %v940 = vmul.f32 %v383, %v939
        %v941 = vmul.f32 %v384, %v939
        %v942 = vmul.f32 %v385, %v939
        %v943 = vmul.f32 %v386, %v939
        %v944 = vstv %s339
        %v945 = vadd.f32 %v940, %v944
        %v946 = vadd.f32 %v941, %v944
        %v947 = vadd.f32 %v942, %v944
        %v948 = vadd.f32 %v943, %v944
        %v949 = vmax.f32 %v945, 0.0
        %v950 = vmax.f32 %v946, 0.0
        %v951 = vmax.f32 %v947, 0.0
        %v952 = vmax.f32 %v948, 0.0
        %v953 = vstv %s371
        %v954 = vmul.f32 %v953, %v949
        %v955 = vmul.f32 %v953, %v950
        %v956 = vmul.f32 %v953, %v951
        %v957 = vmul.f32 %v953, %v952
        %v958 = vadd.f32 %v866, %v954
        %v959 = vadd.f32 %v867, %v955
        %v960 = vadd.f32 %v868, %v956
        %v961 = vadd.f32 %v869, %v957
        %v962 = vstv %s308
        %v963 = vmul.f32 %v383, %v962
        %v964 = vmul.f32 %v384, %v962
        %v965 = vmul.f32 %v385, %v962
        %v966 = vmul.f32 %v386, %v962
        %v967 = vstv %s340
        %v968 = vadd.f32 %v963, %v967
        %v969 = vadd.f32 %v964, %v967
        %v970 = vadd.f32 %v965, %v967
        %v971 = vadd.f32 %v966, %v967
        %v972 = vmax.f32 %v968, 0.0
        %v973 = vmax.f32 %v969, 0.0
        %v974 = vmax.f32 %v970, 0.0
        %v975 = vmax.f32 %v971, 0.0
        %v976 = vstv %s372
        %v977 = vmul.f32 %v976, %v972
        %v978 = vmul.f32 %v976, %v973
        %v979 = vmul.f32 %v976, %v974
        %v980 = vmul.f32 %v976, %v975
        %v981 = vadd.f32 %v889, %v977
        %v982 = vadd.f32 %v890, %v978
        %v983 = vadd.f32 %v891, %v979
        %v984 = vadd.f32 %v892, %v980
        %v985 = vstv %s309
        %v986 = vmul.f32 %v383, %v985
        %v987 = vmul.f32 %v384, %v985
        %v988 = vmul.f32 %v385, %v985
        %v989 = vmul.f32 %v386, %v985
        %v990 = vstv %s341
        %v991 = vadd.f32 %v986, %v990
        %v992 = vadd.f32 %v987, %v990
        %v993 = vadd.f32 %v988, %v990
        %v994 = vadd.f32 %v989, %v990
        %v995 = vmax.f32 %v991, 0.0
        %v996 = vmax.f32 %v992, 0.0
        %v997 = vmax.f32 %v993, 0.0
        %v998 = vmax.f32 %v994, 0.0
        %v999 = vstv %s373
        %v1000 = vmul.f32 %v999, %v995
        %v1001 = vmul.f32 %v999, %v996
        %v1002 = vmul.f32 %v999, %v997
        %v1003 = vmul.f32 %v999, %v998
        %v1004 = vadd.f32 %v912, %v1000
        %v1005 = vadd.f32 %v913, %v1001
        %v1006 = vadd.f32 %v914, %v1002
        %v1007 = vadd.f32 %v915, %v1003
        %v1008 = vstv %s310
        %v1009 = vmul.f32 %v383, %v1008
        %v1010 = vmul.f32 %v384, %v1008
        %v1011 = vmul.f32 %v385, %v1008
        %v1012 = vmul.f32 %v386, %v1008
        %v1013 = vstv %s342
        %v1014 = vadd.f32 %v1009, %v1013
        %v1015 = vadd.f32 %v1010, %v1013
        %v1016 = vadd.f32 %v1011, %v1013
        %v1017 = vadd.f32 %v1012, %v1013
        %v1018 = vmax.f32 %v1014, 0.0
        %v1019 = vmax.f32 %v1015, 0.0
        %v1020 = vmax.f32 %v1016, 0.0
        %v1021 = vmax.f32 %v1017, 0.0
        %v1022 = vstv %s374
        %v1023 = vmul.f32 %v1022, %v1018
        %v1024 = vmul.f32 %v1022, %v1019
        %v1025 = vmul.f32 %v1022, %v1020
        %v1026 = vmul.f32 %v1022, %v1021
        %v1027 = vadd.f32 %v935, %v1023
        %v1028 = vadd.f32 %v936, %v1024
        %v1029 = vadd.f32 %v937, %v1025
        %v1030 = vadd.f32 %v938, %v1026
        %v1031 = vstv %s311
        %v1032 = vmul.f32 %v383, %v1031
        %v1033 = vmul.f32 %v384, %v1031
        %v1034 = vmul.f32 %v385, %v1031
        %v1035 = vmul.f32 %v386, %v1031
        %v1036 = vstv %s343
        %v1037 = vadd.f32 %v1032, %v1036
        %v1038 = vadd.f32 %v1033, %v1036
        %v1039 = vadd.f32 %v1034, %v1036
        %v1040 = vadd.f32 %v1035, %v1036
        %v1041 = vmax.f32 %v1037, 0.0
        %v1042 = vmax.f32 %v1038, 0.0
        %v1043 = vmax.f32 %v1039, 0.0
        %v1044 = vmax.f32 %v1040, 0.0
        %v1045 = vstv %s375
        %v1046 = vmul.f32 %v1045, %v1041
        %v1047 = vmul.f32 %v1045, %v1042
        %v1048 = vmul.f32 %v1045, %v1043
        %v1049 = vmul.f32 %v1045, %v1044
        %v1050 = vadd.f32 %v958, %v1046
        %v1051 = vadd.f32 %v959, %v1047
        %v1052 = vadd.f32 %v960, %v1048
        %v1053 = vadd.f32 %v961, %v1049
        %v1054 = vstv %s312
        %v1055 = vmul.f32 %v383, %v1054
        %v1056 = vmul.f32 %v384, %v1054
        %v1057 = vmul.f32 %v385, %v1054
        %v1058 = vmul.f32 %v386, %v1054
        %v1059 = vstv %s344
        %v1060 = vadd.f32 %v1055, %v1059
        %v1061 = vadd.f32 %v1056, %v1059
        %v1062 = vadd.f32 %v1057, %v1059
        %v1063 = vadd.f32 %v1058, %v1059
        %v1064 = vmax.f32 %v1060, 0.0
        %v1065 = vmax.f32 %v1061, 0.0
        %v1066 = vmax.f32 %v1062, 0.0
        %v1067 = vmax.f32 %v1063, 0.0
        %v1068 = vstv %s376
        %v1069 = vmul.f32 %v1068, %v1064
        %v1070 = vmul.f32 %v1068, %v1065
        %v1071 = vmul.f32 %v1068, %v1066
        %v1072 = vmul.f32 %v1068, %v1067
        %v1073 = vadd.f32 %v981, %v1069
        %v1074 = vadd.f32 %v982, %v1070
        %v1075 = vadd.f32 %v983, %v1071
        %v1076 = vadd.f32 %v984, %v1072
        %v1077 = vstv %s313
        %v1078 = vmul.f32 %v383, %v1077
        %v1079 = vmul.f32 %v384, %v1077
        %v1080 = vmul.f32 %v385, %v1077
        %v1081 = vmul.f32 %v386, %v1077
        %v1082 = vstv %s345
        %v1083 = vadd.f32 %v1078, %v1082
        %v1084 = vadd.f32 %v1079, %v1082
        %v1085 = vadd.f32 %v1080, %v1082
        %v1086 = vadd.f32 %v1081, %v1082
        %v1087 = vmax.f32 %v1083, 0.0
        %v1088 = vmax.f32 %v1084, 0.0
        %v1089 = vmax.f32 %v1085, 0.0
        %v1090 = vmax.f32 %v1086, 0.0
        %v1091 = vstv %s377
        %v1092 = vmul.f32 %v1091, %v1087
        %v1093 = vmul.f32 %v1091, %v1088
        %v1094 = vmul.f32 %v1091, %v1089
        %v1095 = vmul.f32 %v1091, %v1090
        %v1096 = vadd.f32 %v1004, %v1092
        %v1097 = vadd.f32 %v1005, %v1093
        %v1098 = vadd.f32 %v1006, %v1094
        %v1099 = vadd.f32 %v1007, %v1095
        %v1100 = vstv %s314
        %v1101 = vmul.f32 %v383, %v1100
        %v1102 = vmul.f32 %v384, %v1100
        %v1103 = vmul.f32 %v385, %v1100
        %v1104 = vmul.f32 %v386, %v1100
        %v1105 = vstv %s346
        %v1106 = vadd.f32 %v1101, %v1105
        %v1107 = vadd.f32 %v1102, %v1105
        %v1108 = vadd.f32 %v1103, %v1105
        %v1109 = vadd.f32 %v1104, %v1105
        %v1110 = vmax.f32 %v1106, 0.0
        %v1111 = vmax.f32 %v1107, 0.0
        %v1112 = vmax.f32 %v1108, 0.0
        %v1113 = vmax.f32 %v1109, 0.0
        %v1114 = vstv %s378
        %v1115 = vmul.f32 %v1114, %v1110
        %v1116 = vmul.f32 %v1114, %v1111
        %v1117 = vmul.f32 %v1114, %v1112
        %v1118 = vmul.f32 %v1114, %v1113
        %v1119 = vadd.f32 %v1027, %v1115
        %v1120 = vadd.f32 %v1028, %v1116
        %v1121 = vadd.f32 %v1029, %v1117
        %v1122 = vadd.f32 %v1030, %v1118
        %v1123 = vadd.f32 %v1050, %v1073
        %v1124 = vadd.f32 %v1051, %v1074
        %v1125 = vadd.f32 %v1052, %v1075
        %v1126 = vadd.f32 %v1053, %v1076
        %v1127 = vadd.f32 %v1096, %v1119
        %v1128 = vadd.f32 %v1097, %v1120
        %v1129 = vadd.f32 %v1098, %v1121
        %v1130 = vadd.f32 %v1099, %v1122
        %v1131 = vadd.f32 %v1123, %v1127
        %v1132 = vadd.f32 %v1124, %v1128
        %v1133 = vadd.f32 %v1125, %v1129
        %v1134 = vadd.f32 %v1126, %v1130
        %v1135 = vstv %s379
        %v1136 = vadd.f32 %v1131, %v1135
        %v1137 = vadd.f32 %v1132, %v1135
        %v1138 = vadd.f32 %v1133, %v1135
        %v1139 = vadd.f32 %v1134, %v1135
        %s1140 = smul.addr %s380, 8
        %s1141 = scalar_lea.vmem %s282, %s1140 [#allocation11]
        %1142 = vst [vmem:[%s1141] sm:$0xff] %v1136
        %1143 = vst [vmem:[%s1141 + $0x8] sm:$0xff] %v1137
        %1144 = vst [vmem:[%s1141 + $0x10] sm:$0xff] %v1138
        %1145 = vst [vmem:[%s1141 + $0x18] sm:$0xff] %v1139
        %s1146 = sand.u32 %s143, 1
        %s1147 = scalar_lea.sflag [#allocation5], %s1146
        %s1148 = sand.u32 %s143, 1
        %s1149 = smul.addr %s1148, 32
        %s1150 = scalar_lea.vmem [#allocation11], %s1149
        // Predicated region
        $region57: #{tpu_custom_call.1} parent=39 // pred_check
          %p1151 = pneg %p153
        $region58: #{tpu_custom_call.1} parent=39 // pred_check_branch
          %1153 = sbr.rel (%p1151) target = $region60
        $region59: #{tpu_custom_call.1} parent=39 // pred_region
          %1155 = vsyncadd %s1147, 0
          %s1156 = smul.addr %s25, 4
          %s1157 = smul.addr %s1156, 8
          %s1158 = scalar_lea.hbm %s5, %s1157
          %s1160 = sshll.u32 %s1150, 4
          %s1161 = int_to_ptr.vmem [resolvable:$true] %s1160
          %s1162 = sshll.u32 %s1158, 4
          %s1163 = int_to_ptr.hbm [resolvable:$true] %s1162
          %1165 = dma.vmem_to_hbm [thread:$0]  %s1161, 512, %s1163, %s1147
        $region60: #{tpu_custom_call.1} parent=39 // pred_fallthru
          _
      $region40: #{tpu_custom_call.1} parent=5 // pred_fallthru
        _
      %p1166 = scmp.le.s32.totalorder 2, %s20
      // Predicated region
      $region61: #{tpu_custom_call.1} parent=5 // pred_check
        %p1167 = pneg %p1166
      $region62: #{tpu_custom_call.1} parent=5 // pred_check_branch
        %1169 = sbr.rel (%p1167) target = $region64
      $region63: #{tpu_custom_call.1} parent=5 // pred_region
        %s1170 = ssub.s32 %s20, 2
        // Predicated region
        $region65: #{tpu_custom_call.1} parent=63 // pred_check
          %p1171 = pneg %p159
        $region66: #{tpu_custom_call.1} parent=63 // pred_check_branch
          %1173 = sbr.rel (%p1171) target = $region68
        $region67: #{tpu_custom_call.1} parent=63 // pred_region
          %s1174 = sand.u32 %s144, 1
          %s1175 = scalar_lea.sflag [#allocation5], %s1174
          %s1176 = sand.u32 %s144, 1
          %s1177 = smul.addr %s1176, 32
          %s1178 = scalar_lea.vmem [#allocation11], %s1177
          %1180 = dma.done %s1175, 512
        $region68: #{tpu_custom_call.1} parent=63 // pred_fallthru
          _
      $region64: #{tpu_custom_call.1} parent=5 // pred_fallthru
        _
    $region6: #{tpu_custom_call.1} parent=1 // loop_footer
      %s24 = sadd.s32 1, %s20
    $region7: #{tpu_custom_call.1} parent=1 // loop_footer_branch
      %19 = sbr.rel target = $region3
    $region8: #{tpu_custom_call.1} parent=1 // loop_exit
      _
    %1181 = vsyncpa [#allocation4], 1
    %s1182 = scalar_lea.sflag [#allocation4], 1
    %1183 = vsyncpa %s1182, 1
    %1184 = vsyncpa [#allocation5], 1
    %s1185 = scalar_lea.sflag [#allocation5], 1
    %1186 = vsyncpa %s1185, 1
    %1187 = vsyncpa [#allocation6], 1
    %s1188 = scalar_lea.sflag [#allocation6], 1
    %1189 = vsyncpa %s1188, 1
    %1190 = vsyncpa [#allocation9], 1

</llo_original>
